<compile_context>
chip_gen: v6e
topology: v6e:2x2x1
jax: 0.10.0
libtpu: 0.0.40
codegen_flags: <defaults>
</compile_context>

<pallas_src>
import functools

import jax
import jax.numpy as jnp
from jax import lax
from jax.experimental import pallas as pl
from jax.experimental.pallas import tpu as pltpu

KERNEL_SIZE = 7
PAD = KERNEL_SIZE // 2


def _round_up(x, m):
    return (x + m - 1) // m * m


# --------------------------------------------------------------------------- #
# Stage A: lane-dense channel mean + max reduction.                            #
# --------------------------------------------------------------------------- #
def _reduce_kernel(x_ref, o_ref, sum_scr, max_scr, *, C, c_tile, sub, n_c):
    """Grid = (batch, channel_tiles); the channel axis is the reduction axis.

    x_ref   : VMEM (1, c_tile, HW) input block (flattened spatial axis on lanes).
    o_ref   : VMEM (1, 2, HW) f32 output block (row 0 = mean, row 1 = max); written only
              on the last channel step (block is resident across the channel axis).
    sum_scr : VMEM (sub, HW) f32 running per-sublane partial sums.
    max_scr : VMEM (sub, HW) f32 running per-sublane partial maxes.
    """
    c = pl.program_id(1)

    @pl.when(c == 0)
    def _():
        sum_scr[...] = jnp.zeros_like(sum_scr)
        max_scr[...] = jnp.full(max_scr.shape, -jnp.inf, dtype=max_scr.dtype)

    def _accumulate(n_groups, tail):
        """Fold n_groups (sub, HW) chunks (+ a `tail`-row masked chunk) into the scratch."""

        def body(g, carry):
            s, m = carry
            off = pl.multiple_of(g * sub, sub)
            chunk = x_ref[0, pl.ds(off, sub), :].astype(jnp.float32)
            return s + chunk, jnp.maximum(m, chunk)

        s, m = sum_scr[...], max_scr[...]
        if n_groups > 0:
            s, m = lax.fori_loop(0, n_groups, body, (s, m), unroll=min(8, n_groups))
        if tail:  # static: ragged last channel block -> mask the invalid rows
            chunk = x_ref[0, pl.ds(n_groups * sub, sub), :].astype(jnp.float32)
            row = lax.broadcasted_iota(jnp.int32, chunk.shape, 0)
            keep = row < tail
            s = s + jnp.where(keep, chunk, 0.0)
            m = jnp.maximum(m, jnp.where(keep, chunk, -jnp.inf))
        sum_scr[...] = s
        max_scr[...] = m

    n_full_groups = c_tile // sub
    rem = C - (n_c - 1) * c_tile          # valid channels in the last block

    if rem == c_tile:                      # C % c_tile == 0: every block is full
        _accumulate(n_full_groups, 0)
    else:
        @pl.when(c < n_c - 1)
        def _():
            _accumulate(n_full_groups, 0)

        @pl.when(c == n_c - 1)
        def _():
            _accumulate(rem // sub, rem % sub)

    @pl.when(c == n_c - 1)
    def _():
        inv_c = jnp.float32(1.0 / C)
        o_ref[0, 0:1, :] = (jnp.sum(sum_scr[...], axis=0, keepdims=True)
                            * inv_c).astype(o_ref.dtype)
        o_ref[0, 1:2, :] = jnp.max(max_scr[...], axis=0,
                                   keepdims=True).astype(o_ref.dtype)


# --------------------------------------------------------------------------- #
# Stage B: 7x7 conv over the (mean, max) planes + sigmoid.                     #
# --------------------------------------------------------------------------- #
def _conv_kernel(w_ref, p_ref, o_ref, avg_scr, max_scr, *, H, W, K):
    """Grid = (batch,).

    w_ref   : SMEM (2*K*K,) f32 conv weights (avg-channel taps, then max-channel taps).
    p_ref   : VMEM (1, 2, H, W) f32 reduced planes.
    o_ref   : VMEM (1, 1, H, W) output block.
    avg_scr : VMEM (H+2p, W+2p) f32 zero-padded mean plane.
    max_scr : VMEM (H+2p, W+2p) f32 zero-padded max plane.
    """
    pad = K // 2
    Hp, Wp = H + 2 * pad, W + 2 * pad
    KK = K * K

    # Zero the padded planes once, then write the interiors ("same" conv padding).
    avg_scr[...] = jnp.zeros((Hp, Wp), jnp.float32)
    max_scr[...] = jnp.zeros((Hp, Wp), jnp.float32)
    avg_scr[pad:pad + H, pad:pad + W] = p_ref[0, 0]
    max_scr[pad:pad + H, pad:pad + W] = p_ref[0, 1]

    # Hoist the K lane-axis (kw) shifts per plane: 2*K offset ref loads total.
    avg_cols = [avg_scr[:, kw:kw + W] for kw in range(K)]
    max_cols = [max_scr[:, kw:kw + W] for kw in range(K)]

    # kh-factored conv: each kh accumulates its kw taps over the full padded-row extent
    # (pure VALU, 2 partial accumulators for ILP); only K sublane-offset slices remain.
    acc = jnp.zeros((H, W), jnp.float32)
    for kh in range(K):
        r0 = jnp.zeros((Hp, W), jnp.float32)
        r1 = jnp.zeros((Hp, W), jnp.float32)
        for kw in range(K):
            tap = kh * K + kw
            contrib = w_ref[tap] * avg_cols[kw] + w_ref[KK + tap] * max_cols[kw]
            if kw % 2 == 0:
                r0 = r0 + contrib
            else:
                r1 = r1 + contrib
        acc = acc + (r0 + r1)[kh:kh + H, :]

    o_ref[0, 0] = jax.nn.sigmoid(acc).astype(o_ref.dtype)


# --------------------------------------------------------------------------- #
# Tiling / VMEM sizing (padded-layout aware).                                  #
# --------------------------------------------------------------------------- #
def _pick_channel_tile(C, HW, itemsize, budget_bytes=8 * 1024 * 1024):
    """Largest multiple-of-8 channel tile whose *padded* VMEM block stays under
    budget_bytes per pipeline buffer (~8 MiB -> 16 MiB double-buffered: inside the
    scoped-VMEM defaults and v7x's 64 MiB physical VMEM with headroom, and big enough
    to amortize the ~0.35 us per grid step on v5e/v6e)."""
    if C <= 8:
        return C, C                       # single block; sub == C
    lane_hw = _round_up(HW, 128)
    max_ch = max(8, budget_bytes // (lane_hw * itemsize))
    c_tile = max(8, min((max_ch // 8) * 8, (C // 8) * 8))
    return c_tile, 8


def _vmem_limit_bytes(c_tile, sub, HW, itemsize):
    """Actual double-buffered need (padded layout) + margin, instead of a flat 48 MiB."""
    lane_hw = _round_up(HW, 128)
    sub_in = max(8, 32 // itemsize)       # sublane rounding for the input dtype
    in_block = _round_up(c_tile, sub_in) * lane_hw * itemsize
    out_block = 8 * lane_hw * 4
    scratch = 2 * _round_up(sub, 8) * lane_hw * 4
    need = 2 * in_block + 2 * out_block + scratch + (2 << 20)
    return int(min(max(need, 16 << 20), 56 << 20))


# --------------------------------------------------------------------------- #
# Public wrapper.                                                              #
# --------------------------------------------------------------------------- #
@jax.jit
def spatial_attention(x, weight):
    """x: (N, C, H, W); weight: (1, 2, K, K) from nn.Conv2d(2, 1, K, padding=K//2, bias=False)."""
    N, C, H, W = x.shape
    K = weight.shape[-1]
    pad = K // 2
    HW = H * W

    itemsize = jnp.dtype(x.dtype).itemsize
    c_tile, sub = _pick_channel_tile(C, HW, itemsize)
    n_c = pl.cdiv(C, c_tile)

    x_flat = x.reshape(N, C, HW)                       # free, contiguous reshape
    w_flat = weight.reshape(-1).astype(jnp.float32)    # (2*K*K,) scalars -> SMEM

    # ---- Stage A: channel mean + max (lane-dense, memory-bound) ---- #
    planes = pl.pallas_call(
        functools.partial(_reduce_kernel, C=C, c_tile=c_tile, sub=sub, n_c=n_c),
        out_shape=jax.ShapeDtypeStruct((N, 2, HW), jnp.float32),
        grid=(N, n_c),                                 # reduction (channel) axis last
        in_specs=[pl.BlockSpec((1, c_tile, HW), lambda n, c: (n, c, 0))],
        out_specs=pl.BlockSpec((1, 2, HW), lambda n, c: (n, 0, 0)),  # resident across c
        scratch_shapes=[
            pltpu.VMEM((sub, HW), jnp.float32),        # running channel sums
            pltpu.VMEM((sub, HW), jnp.float32),        # running channel maxes
        ],
        compiler_params=pltpu.CompilerParams(
            dimension_semantics=("parallel", "arbitrary"),
            vmem_limit_bytes=_vmem_limit_bytes(c_tile, sub, HW, itemsize),
        ),
    )(x_flat)

    # ---- Stage B: 7x7 conv over the 2 planes + sigmoid (tiny) ---- #
    planes_2d = planes.reshape(N, 2, H, W)             # free, contiguous reshape
    out = pl.pallas_call(
        functools.partial(_conv_kernel, H=H, W=W, K=K),
        out_shape=jax.ShapeDtypeStruct((N, 1, H, W), x.dtype),
        grid=(N,),
        in_specs=[
            pl.BlockSpec(memory_space=pltpu.SMEM),                    # conv weights
            pl.BlockSpec((1, 2, H, W), lambda n: (n, 0, 0, 0)),
        ],
        out_specs=pl.BlockSpec((1, 1, H, W), lambda n: (n, 0, 0, 0)),
        scratch_shapes=[
            pltpu.VMEM((H + 2 * pad, W + 2 * pad), jnp.float32),
            pltpu.VMEM((H + 2 * pad, W + 2 * pad), jnp.float32),
        ],
        compiler_params=pltpu.CompilerParams(dimension_semantics=("parallel",)),
    )(w_flat, planes_2d)
    return out


def _reference(x, weight):
    avg = jnp.mean(x, axis=1, keepdims=True)
    mx = jnp.max(x, axis=1, keepdims=True)
    cat = jnp.concatenate([avg, mx], axis=1)
    out = jax.lax.conv_general_dilated(
        cat.astype(jnp.float32), weight.astype(jnp.float32),
        window_strides=(1, 1), padding=[(PAD, PAD), (PAD, PAD)],
        dimension_numbers=("NCHW", "OIHW", "NCHW"))
    return jax.nn.sigmoid(out).astype(x.dtype)


if __name__ == "__main__":
    key = jax.random.PRNGKey(0)
    kx, kw, kx2 = jax.random.split(key, 3)

    # Deterministic conv weight, shape (out=1, in=2, K, K) like nn.Conv2d(2, 1, 7, bias=False).
    fan_in = 2 * KERNEL_SIZE * KERNEL_SIZE
    bound = 1.0 / (fan_in ** 0.5)
    weight = jax.random.uniform(
        kw, (1, 2, KERNEL_SIZE, KERNEL_SIZE),
        minval=-bound, maxval=bound, dtype=jnp.float32)

    # Primary case: small module-consistent shapes (single channel block).
    N, C, H, W = 2, 4, 16, 16
    x = jax.random.normal(kx, (N, C, H, W), dtype=jnp.float32)
    out = jax.block_until_ready(spatial_attention(x, weight))
    ref = _reference(x, weight)
    assert out.shape == (N, 1, H, W)
    assert jnp.allclose(out, ref, atol=1e-5, rtol=1e-5)

    # Second case: exercises the multi-step channel grid with a ragged (masked) last block.
    N2, C2, H2, W2 = 1, 20, 16, 16
    x2 = jax.random.normal(kx2, (N2, C2, H2, W2), dtype=jnp.float32)
    out2 = jax.block_until_ready(spatial_attention(x2, weight))
    ref2 = _reference(x2, weight)
    assert out2.shape == (N2, 1, H2, W2)
    assert jnp.allclose(out2, ref2, atol=1e-5, rtol=1e-5)

    print("KERNEL_OK")
</pallas_src>

<mosaic_0001>
module attributes {stable_mosaic.version = 11 : i64} {
  func.func @_reduce_kernel(%arg0: i32, %arg1: i32, %arg2: memref<1x4x256xf32, #tpu.memory_space<vmem>>, %arg3: memref<1x2x256xf32, #tpu.memory_space<vmem>>, %arg4: memref<4x256xf32, #tpu.memory_space<vmem>>, %arg5: memref<4x256xf32, #tpu.memory_space<vmem>>) attributes {dimension_semantics = [#tpu.dimension_semantics<parallel>, #tpu.dimension_semantics<arbitrary>], iteration_bounds = array<i64: 2, 1>, scalar_prefetch = 0 : i64, scratch_operands = 2 : i64, tpu.core_type = #tpu.core_type<tc>, window_params = [{transform_indices = @transform_0, window_bounds = array<i64: 1, 4, 256>}, {transform_indices = @transform_1, window_bounds = array<i64: 1, 2, 256>}]} {
    %c0_i32 = arith.constant 0 : i32
    %0 = arith.cmpi eq, %arg1, %c0_i32 : i32
    %1 = arith.extui %0 : i1 to i32
    %c0_i32_0 = arith.constant 0 : i32
    %2 = arith.cmpi ne, %1, %c0_i32_0 : i32
    scf.if %2 {
      %cst = arith.constant 0.000000e+00 : f32
      %17 = vector.broadcast %cst : f32 to vector<4x256xf32>
      %c0_13 = arith.constant 0 : index
      %c0_14 = arith.constant 0 : index
      %18 = vector.load %arg4[%c0_13, %c0_14] : memref<4x256xf32, #tpu.memory_space<vmem>>, vector<4x256xf32>
      tpu.vector_store %arg4[%c0_13, %c0_14], %17 {strides = array<i32>} : memref<4x256xf32, #tpu.memory_space<vmem>>, vector<4x256xf32>,
      %cst_15 = arith.constant 0xFF800000 : f32
      %19 = vector.broadcast %cst_15 : f32 to vector<4x256xf32>
      %c0_16 = arith.constant 0 : index
      %c0_17 = arith.constant 0 : index
      %20 = vector.load %arg5[%c0_16, %c0_17] : memref<4x256xf32, #tpu.memory_space<vmem>>, vector<4x256xf32>
      tpu.vector_store %arg5[%c0_16, %c0_17], %19 {strides = array<i32>} : memref<4x256xf32, #tpu.memory_space<vmem>>, vector<4x256xf32>,
    } else {
    }
    %c0 = arith.constant 0 : index
    %c0_1 = arith.constant 0 : index
    %3 = vector.load %arg4[%c0, %c0_1] : memref<4x256xf32, #tpu.memory_space<vmem>>, vector<4x256xf32>
    %c0_2 = arith.constant 0 : index
    %c0_3 = arith.constant 0 : index
    %4 = vector.load %arg5[%c0_2, %c0_3] : memref<4x256xf32, #tpu.memory_space<vmem>>, vector<4x256xf32>
    %c0_i32_4 = arith.constant 0 : i32
    %c4_i32 = arith.constant 4 : i32
    %5 = arith.muli %c0_i32_4, %c4_i32 : i32
    %6 = tpu.assume_multiple %5, 4 : i32
    %c0_5 = arith.constant 0 : index
    %7 = arith.index_cast %6 : i32 to index
    %c0_6 = arith.constant 0 : index
    %8 = vector.load %arg2[%c0_5, %7, %c0_6] : memref<1x4x256xf32, #tpu.memory_space<vmem>>, vector<1x4x256xf32>
    %9 = vector.shape_cast %8 : vector<1x4x256xf32> to vector<4x256xf32>
    %10 = arith.addf %3, %9 : vector<4x256xf32>
    %11 = arith.maximumf %4, %9 : vector<4x256xf32>
    %c1_i32 = arith.constant 1 : i32
    %c0_7 = arith.constant 0 : index
    %c0_8 = arith.constant 0 : index
    %12 = vector.load %arg4[%c0_7, %c0_8] : memref<4x256xf32, #tpu.memory_space<vmem>>, vector<4x256xf32>
    tpu.vector_store %arg4[%c0_7, %c0_8], %10 {strides = array<i32>} : memref<4x256xf32, #tpu.memory_space<vmem>>, vector<4x256xf32>,
    %c0_9 = arith.constant 0 : index
    %c0_10 = arith.constant 0 : index
    %13 = vector.load %arg5[%c0_9, %c0_10] : memref<4x256xf32, #tpu.memory_space<vmem>>, vector<4x256xf32>
    tpu.vector_store %arg5[%c0_9, %c0_10], %11 {strides = array<i32>} : memref<4x256xf32, #tpu.memory_space<vmem>>, vector<4x256xf32>,
    %c0_i32_11 = arith.constant 0 : i32
    %14 = arith.cmpi eq, %arg1, %c0_i32_11 : i32
    %15 = arith.extui %14 : i1 to i32
    %c0_i32_12 = arith.constant 0 : i32
    %16 = arith.cmpi ne, %15, %c0_i32_12 : i32
    scf.if %16 {
      %c0_13 = arith.constant 0 : index
      %c0_14 = arith.constant 0 : index
      %17 = vector.load %arg4[%c0_13, %c0_14] : memref<4x256xf32, #tpu.memory_space<vmem>>, vector<4x256xf32>
      %cst = arith.constant dense<0.000000e+00> : vector<256xf32>
      %18 = vector.multi_reduction <add>, %17, %cst [0] : vector<4x256xf32> to vector<256xf32>
      %19 = vector.shape_cast %18 : vector<256xf32> to vector<1x256xf32>
      %cst_15 = arith.constant 2.500000e-01 : f32
      %20 = vector.broadcast %cst_15 : f32 to vector<1x256xf32>
      %21 = arith.mulf %19, %20 : vector<1x256xf32>
      %c0_16 = arith.constant 0 : index
      %c0_17 = arith.constant 0 : index
      %c0_18 = arith.constant 0 : index
      %22 = vector.load %arg3[%c0_16, %c0_17, %c0_18] : memref<1x2x256xf32, #tpu.memory_space<vmem>>, vector<1x1x256xf32>
      %23 = vector.shape_cast %22 : vector<1x1x256xf32> to vector<1x256xf32>
      %24 = vector.shape_cast %21 : vector<1x256xf32> to vector<1x1x256xf32>
      tpu.vector_store %arg3[%c0_16, %c0_17, %c0_18], %24 {strides = array<i32>} : memref<1x2x256xf32, #tpu.memory_space<vmem>>, vector<1x1x256xf32>,
      %c0_19 = arith.constant 0 : index
      %c0_20 = arith.constant 0 : index
      %25 = vector.load %arg5[%c0_19, %c0_20] : memref<4x256xf32, #tpu.memory_space<vmem>>, vector<4x256xf32>
      %cst_21 = arith.constant dense<0xFF800000> : vector<256xf32>
      %26 = vector.multi_reduction <maximumf>, %25, %cst_21 [0] : vector<4x256xf32> to vector<256xf32>
      %27 = vector.shape_cast %26 : vector<256xf32> to vector<1x256xf32>
      %c0_22 = arith.constant 0 : index
      %c1 = arith.constant 1 : index
      %c0_23 = arith.constant 0 : index
      %28 = vector.load %arg3[%c0_22, %c1, %c0_23] : memref<1x2x256xf32, #tpu.memory_space<vmem>>, vector<1x1x256xf32>
      %29 = vector.shape_cast %28 : vector<1x1x256xf32> to vector<1x256xf32>
      %30 = vector.shape_cast %27 : vector<1x256xf32> to vector<1x1x256xf32>
      tpu.vector_store %arg3[%c0_22, %c1, %c0_23], %30 {strides = array<i32>} : memref<1x2x256xf32, #tpu.memory_space<vmem>>, vector<1x1x256xf32>,
    } else {
    }
    return
  }
  func.func @transform_0(%arg0: i32, %arg1: i32) -> (i32, i32, i32) {
    %c0_i32 = arith.constant 0 : i32
    %c0_i32_0 = arith.constant 0 : i32
    return %arg0, %arg1, %c0_i32 : i32, i32, i32
  }
  func.func @transform_1(%arg0: i32, %arg1: i32) -> (i32, i32, i32) {
    %c0_i32 = arith.constant 0 : i32
    %c0_i32_0 = arith.constant 0 : i32
    %c0_i32_1 = arith.constant 0 : i32
    return %arg0, %c0_i32, %c0_i32_0 : i32, i32, i32
  }
}

module attributes {stable_mosaic.version = 11 : i64} {
  func.func @_conv_kernel(%arg0: i32, %arg1: memref<98xf32, #tpu.memory_space<smem>>, %arg2: memref<1x2x16x16xf32, #tpu.memory_space<vmem>>, %arg3: memref<1x1x16x16xf32, #tpu.memory_space<vmem>>, %arg4: memref<22x22xf32, #tpu.memory_space<vmem>>, %arg5: memref<22x22xf32, #tpu.memory_space<vmem>>) attributes {dimension_semantics = [#tpu.dimension_semantics<parallel>], iteration_bounds = array<i64: 2>, scalar_prefetch = 0 : i64, scratch_operands = 2 : i64, tpu.core_type = #tpu.core_type<tc>, window_params = [{transform_indices = @transform_0, window_bounds = array<i64: 98>}, {transform_indices = @transform_1, window_bounds = array<i64: 1, 2, 16, 16>}, {transform_indices = @transform_2, window_bounds = array<i64: 1, 1, 16, 16>}]} {
    %cst = arith.constant 0.000000e+00 : f32
    %0 = vector.broadcast %cst : f32 to vector<22x22xf32>
    %c0 = arith.constant 0 : index
    %c0_0 = arith.constant 0 : index
    %1 = vector.load %arg4[%c0, %c0_0] : memref<22x22xf32, #tpu.memory_space<vmem>>, vector<22x22xf32>
    tpu.vector_store %arg4[%c0, %c0_0], %0 {strides = array<i32>} : memref<22x22xf32, #tpu.memory_space<vmem>>, vector<22x22xf32>,
    %cst_1 = arith.constant 0.000000e+00 : f32
    %2 = vector.broadcast %cst_1 : f32 to vector<22x22xf32>
    %c0_2 = arith.constant 0 : index
    %c0_3 = arith.constant 0 : index
    %3 = vector.load %arg5[%c0_2, %c0_3] : memref<22x22xf32, #tpu.memory_space<vmem>>, vector<22x22xf32>
    tpu.vector_store %arg5[%c0_2, %c0_3], %2 {strides = array<i32>} : memref<22x22xf32, #tpu.memory_space<vmem>>, vector<22x22xf32>,
    %c0_4 = arith.constant 0 : index
    %c0_5 = arith.constant 0 : index
    %c0_6 = arith.constant 0 : index
    %c0_7 = arith.constant 0 : index
    %4 = vector.load %arg2[%c0_4, %c0_5, %c0_6, %c0_7] : memref<1x2x16x16xf32, #tpu.memory_space<vmem>>, vector<1x1x16x16xf32>
    %5 = vector.shape_cast %4 : vector<1x1x16x16xf32> to vector<16x16xf32>
    %c3 = arith.constant 3 : index
    %c3_8 = arith.constant 3 : index
    %6 = vector.load %arg4[%c3, %c3_8] : memref<22x22xf32, #tpu.memory_space<vmem>>, vector<16x16xf32>
    tpu.vector_store %arg4[%c3, %c3_8], %5 {strides = array<i32>} : memref<22x22xf32, #tpu.memory_space<vmem>>, vector<16x16xf32>,
    %c0_9 = arith.constant 0 : index
    %c1 = arith.constant 1 : index
    %c0_10 = arith.constant 0 : index
    %c0_11 = arith.constant 0 : index
    %7 = vector.load %arg2[%c0_9, %c1, %c0_10, %c0_11] : memref<1x2x16x16xf32, #tpu.memory_space<vmem>>, vector<1x1x16x16xf32>
    %8 = vector.shape_cast %7 : vector<1x1x16x16xf32> to vector<16x16xf32>
    %c3_12 = arith.constant 3 : index
    %c3_13 = arith.constant 3 : index
    %9 = vector.load %arg5[%c3_12, %c3_13] : memref<22x22xf32, #tpu.memory_space<vmem>>, vector<16x16xf32>
    tpu.vector_store %arg5[%c3_12, %c3_13], %8 {strides = array<i32>} : memref<22x22xf32, #tpu.memory_space<vmem>>, vector<16x16xf32>,
    %c0_14 = arith.constant 0 : index
    %c0_15 = arith.constant 0 : index
    %10 = vector.load %arg4[%c0_14, %c0_15] : memref<22x22xf32, #tpu.memory_space<vmem>>, vector<22x16xf32>
    %c0_16 = arith.constant 0 : index
    %c1_17 = arith.constant 1 : index
    %11 = vector.load %arg4[%c0_16, %c1_17] : memref<22x22xf32, #tpu.memory_space<vmem>>, vector<22x16xf32>
    %c0_18 = arith.constant 0 : index
    %c2 = arith.constant 2 : index
    %12 = vector.load %arg4[%c0_18, %c2] : memref<22x22xf32, #tpu.memory_space<vmem>>, vector<22x16xf32>
    %c0_19 = arith.constant 0 : index
    %c3_20 = arith.constant 3 : index
    %13 = vector.load %arg4[%c0_19, %c3_20] : memref<22x22xf32, #tpu.memory_space<vmem>>, vector<22x16xf32>
    %c0_21 = arith.constant 0 : index
    %c4 = arith.constant 4 : index
    %14 = vector.load %arg4[%c0_21, %c4] : memref<22x22xf32, #tpu.memory_space<vmem>>, vector<22x16xf32>
    %c0_22 = arith.constant 0 : index
    %c5 = arith.constant 5 : index
    %15 = vector.load %arg4[%c0_22, %c5] : memref<22x22xf32, #tpu.memory_space<vmem>>, vector<22x16xf32>
    %c0_23 = arith.constant 0 : index
    %c6 = arith.constant 6 : index
    %16 = vector.load %arg4[%c0_23, %c6] : memref<22x22xf32, #tpu.memory_space<vmem>>, vector<22x16xf32>
    %c0_24 = arith.constant 0 : index
    %c0_25 = arith.constant 0 : index
    %17 = vector.load %arg5[%c0_24, %c0_25] : memref<22x22xf32, #tpu.memory_space<vmem>>, vector<22x16xf32>
    %c0_26 = arith.constant 0 : index
    %c1_27 = arith.constant 1 : index
    %18 = vector.load %arg5[%c0_26, %c1_27] : memref<22x22xf32, #tpu.memory_space<vmem>>, vector<22x16xf32>
    %c0_28 = arith.constant 0 : index
    %c2_29 = arith.constant 2 : index
    %19 = vector.load %arg5[%c0_28, %c2_29] : memref<22x22xf32, #tpu.memory_space<vmem>>, vector<22x16xf32>
    %c0_30 = arith.constant 0 : index
    %c3_31 = arith.constant 3 : index
    %20 = vector.load %arg5[%c0_30, %c3_31] : memref<22x22xf32, #tpu.memory_space<vmem>>, vector<22x16xf32>
    %c0_32 = arith.constant 0 : index
    %c4_33 = arith.constant 4 : index
    %21 = vector.load %arg5[%c0_32, %c4_33] : memref<22x22xf32, #tpu.memory_space<vmem>>, vector<22x16xf32>
    %c0_34 = arith.constant 0 : index
    %c5_35 = arith.constant 5 : index
    %22 = vector.load %arg5[%c0_34, %c5_35] : memref<22x22xf32, #tpu.memory_space<vmem>>, vector<22x16xf32>
    %c0_36 = arith.constant 0 : index
    %c6_37 = arith.constant 6 : index
    %23 = vector.load %arg5[%c0_36, %c6_37] : memref<22x22xf32, #tpu.memory_space<vmem>>, vector<22x16xf32>
    %cst_38 = arith.constant 0.000000e+00 : f32
    %24 = vector.broadcast %cst_38 : f32 to vector<16x16xf32>
    %cst_39 = arith.constant 0.000000e+00 : f32
    %25 = vector.broadcast %cst_39 : f32 to vector<22x16xf32>
    %cst_40 = arith.constant 0.000000e+00 : f32
    %26 = vector.broadcast %cst_40 : f32 to vector<22x16xf32>
    %c0_41 = arith.constant 0 : index
    %27 = memref.load %arg1[%c0_41] : memref<98xf32, #tpu.memory_space<smem>>
    %28 = vector.broadcast %27 : f32 to vector<22x16xf32>
    %29 = arith.mulf %28, %10 : vector<22x16xf32>
    %c49 = arith.constant 49 : index
    %30 = memref.load %arg1[%c49] : memref<98xf32, #tpu.memory_space<smem>>
    %31 = vector.broadcast %30 : f32 to vector<22x16xf32>
    %32 = arith.mulf %31, %17 : vector<22x16xf32>
    %33 = arith.addf %29, %32 : vector<22x16xf32>
    %34 = arith.addf %25, %33 : vector<22x16xf32>
    %c1_42 = arith.constant 1 : index
    %35 = memref.load %arg1[%c1_42] : memref<98xf32, #tpu.memory_space<smem>>
    %36 = vector.broadcast %35 : f32 to vector<22x16xf32>
    %37 = arith.mulf %36, %11 : vector<22x16xf32>
    %c50 = arith.constant 50 : index
    %38 = memref.load %arg1[%c50] : memref<98xf32, #tpu.memory_space<smem>>
    %39 = vector.broadcast %38 : f32 to vector<22x16xf32>
    %40 = arith.mulf %39, %18 : vector<22x16xf32>
    %41 = arith.addf %37, %40 : vector<22x16xf32>
    %42 = arith.addf %26, %41 : vector<22x16xf32>
    %c2_43 = arith.constant 2 : index
    %43 = memref.load %arg1[%c2_43] : memref<98xf32, #tpu.memory_space<smem>>
    %44 = vector.broadcast %43 : f32 to vector<22x16xf32>
    %45 = arith.mulf %44, %12 : vector<22x16xf32>
    %c51 = arith.constant 51 : index
    %46 = memref.load %arg1[%c51] : memref<98xf32, #tpu.memory_space<smem>>
    %47 = vector.broadcast %46 : f32 to vector<22x16xf32>
    %48 = arith.mulf %47, %19 : vector<22x16xf32>
    %49 = arith.addf %45, %48 : vector<22x16xf32>
    %50 = arith.addf %34, %49 : vector<22x16xf32>
    %c3_44 = arith.constant 3 : index
    %51 = memref.load %arg1[%c3_44] : memref<98xf32, #tpu.memory_space<smem>>
    %52 = vector.broadcast %51 : f32 to vector<22x16xf32>
    %53 = arith.mulf %52, %13 : vector<22x16xf32>
    %c52 = arith.constant 52 : index
    %54 = memref.load %arg1[%c52] : memref<98xf32, #tpu.memory_space<smem>>
    %55 = vector.broadcast %54 : f32 to vector<22x16xf32>
    %56 = arith.mulf %55, %20 : vector<22x16xf32>
    %57 = arith.addf %53, %56 : vector<22x16xf32>
    %58 = arith.addf %42, %57 : vector<22x16xf32>
    %c4_45 = arith.constant 4 : index
    %59 = memref.load %arg1[%c4_45] : memref<98xf32, #tpu.memory_space<smem>>
    %60 = vector.broadcast %59 : f32 to vector<22x16xf32>
    %61 = arith.mulf %60, %14 : vector<22x16xf32>
    %c53 = arith.constant 53 : index
    %62 = memref.load %arg1[%c53] : memref<98xf32, #tpu.memory_space<smem>>
    %63 = vector.broadcast %62 : f32 to vector<22x16xf32>
    %64 = arith.mulf %63, %21 : vector<22x16xf32>
    %65 = arith.addf %61, %64 : vector<22x16xf32>
    %66 = arith.addf %50, %65 : vector<22x16xf32>
    %c5_46 = arith.constant 5 : index
    %67 = memref.load %arg1[%c5_46] : memref<98xf32, #tpu.memory_space<smem>>
    %68 = vector.broadcast %67 : f32 to vector<22x16xf32>
    %69 = arith.mulf %68, %15 : vector<22x16xf32>
    %c54 = arith.constant 54 : index
    %70 = memref.load %arg1[%c54] : memref<98xf32, #tpu.memory_space<smem>>
    %71 = vector.broadcast %70 : f32 to vector<22x16xf32>
    %72 = arith.mulf %71, %22 : vector<22x16xf32>
    %73 = arith.addf %69, %72 : vector<22x16xf32>
    %74 = arith.addf %58, %73 : vector<22x16xf32>
    %c6_47 = arith.constant 6 : index
    %75 = memref.load %arg1[%c6_47] : memref<98xf32, #tpu.memory_space<smem>>
    %76 = vector.broadcast %75 : f32 to vector<22x16xf32>
    %77 = arith.mulf %76, %16 : vector<22x16xf32>
    %c55 = arith.constant 55 : index
    %78 = memref.load %arg1[%c55] : memref<98xf32, #tpu.memory_space<smem>>
    %79 = vector.broadcast %78 : f32 to vector<22x16xf32>
    %80 = arith.mulf %79, %23 : vector<22x16xf32>
    %81 = arith.addf %77, %80 : vector<22x16xf32>
    %82 = arith.addf %66, %81 : vector<22x16xf32>
    %83 = arith.addf %82, %74 : vector<22x16xf32>
    %84 = vector.extract_strided_slice %83 {offsets = [0, 0], sizes = [16, 16], strides = [1, 1]} : vector<22x16xf32> to vector<16x16xf32>
    %85 = arith.addf %24, %84 : vector<16x16xf32>
    %cst_48 = arith.constant 0.000000e+00 : f32
    %86 = vector.broadcast %cst_48 : f32 to vector<22x16xf32>
    %cst_49 = arith.constant 0.000000e+00 : f32
    %87 = vector.broadcast %cst_49 : f32 to vector<22x16xf32>
    %c7 = arith.constant 7 : index
    %88 = memref.load %arg1[%c7] : memref<98xf32, #tpu.memory_space<smem>>
    %89 = vector.broadcast %88 : f32 to vector<22x16xf32>
    %90 = arith.mulf %89, %10 : vector<22x16xf32>
    %c56 = arith.constant 56 : index
    %91 = memref.load %arg1[%c56] : memref<98xf32, #tpu.memory_space<smem>>
    %92 = vector.broadcast %91 : f32 to vector<22x16xf32>
    %93 = arith.mulf %92, %17 : vector<22x16xf32>
    %94 = arith.addf %90, %93 : vector<22x16xf32>
    %95 = arith.addf %86, %94 : vector<22x16xf32>
    %c8 = arith.constant 8 : index
    %96 = memref.load %arg1[%c8] : memref<98xf32, #tpu.memory_space<smem>>
    %97 = vector.broadcast %96 : f32 to vector<22x16xf32>
    %98 = arith.mulf %97, %11 : vector<22x16xf32>
    %c57 = arith.constant 57 : index
    %99 = memref.load %arg1[%c57] : memref<98xf32, #tpu.memory_space<smem>>
    %100 = vector.broadcast %99 : f32 to vector<22x16xf32>
    %101 = arith.mulf %100, %18 : vector<22x16xf32>
    %102 = arith.addf %98, %101 : vector<22x16xf32>
    %103 = arith.addf %87, %102 : vector<22x16xf32>
    %c9 = arith.constant 9 : index
    %104 = memref.load %arg1[%c9] : memref<98xf32, #tpu.memory_space<smem>>
    %105 = vector.broadcast %104 : f32 to vector<22x16xf32>
    %106 = arith.mulf %105, %12 : vector<22x16xf32>
    %c58 = arith.constant 58 : index
    %107 = memref.load %arg1[%c58] : memref<98xf32, #tpu.memory_space<smem>>
    %108 = vector.broadcast %107 : f32 to vector<22x16xf32>
    %109 = arith.mulf %108, %19 : vector<22x16xf32>
    %110 = arith.addf %106, %109 : vector<22x16xf32>
    %111 = arith.addf %95, %110 : vector<22x16xf32>
    %c10 = arith.constant 10 : index
    %112 = memref.load %arg1[%c10] : memref<98xf32, #tpu.memory_space<smem>>
    %113 = vector.broadcast %112 : f32 to vector<22x16xf32>
    %114 = arith.mulf %113, %13 : vector<22x16xf32>
    %c59 = arith.constant 59 : index
    %115 = memref.load %arg1[%c59] : memref<98xf32, #tpu.memory_space<smem>>
    %116 = vector.broadcast %115 : f32 to vector<22x16xf32>
    %117 = arith.mulf %116, %20 : vector<22x16xf32>
    %118 = arith.addf %114, %117 : vector<22x16xf32>
    %119 = arith.addf %103, %118 : vector<22x16xf32>
    %c11 = arith.constant 11 : index
    %120 = memref.load %arg1[%c11] : memref<98xf32, #tpu.memory_space<smem>>
    %121 = vector.broadcast %120 : f32 to vector<22x16xf32>
    %122 = arith.mulf %121, %14 : vector<22x16xf32>
    %c60 = arith.constant 60 : index
    %123 = memref.load %arg1[%c60] : memref<98xf32, #tpu.memory_space<smem>>
    %124 = vector.broadcast %123 : f32 to vector<22x16xf32>
    %125 = arith.mulf %124, %21 : vector<22x16xf32>
    %126 = arith.addf %122, %125 : vector<22x16xf32>
    %127 = arith.addf %111, %126 : vector<22x16xf32>
    %c12 = arith.constant 12 : index
    %128 = memref.load %arg1[%c12] : memref<98xf32, #tpu.memory_space<smem>>
    %129 = vector.broadcast %128 : f32 to vector<22x16xf32>
    %130 = arith.mulf %129, %15 : vector<22x16xf32>
    %c61 = arith.constant 61 : index
    %131 = memref.load %arg1[%c61] : memref<98xf32, #tpu.memory_space<smem>>
    %132 = vector.broadcast %131 : f32 to vector<22x16xf32>
    %133 = arith.mulf %132, %22 : vector<22x16xf32>
    %134 = arith.addf %130, %133 : vector<22x16xf32>
    %135 = arith.addf %119, %134 : vector<22x16xf32>
    %c13 = arith.constant 13 : index
    %136 = memref.load %arg1[%c13] : memref<98xf32, #tpu.memory_space<smem>>
    %137 = vector.broadcast %136 : f32 to vector<22x16xf32>
    %138 = arith.mulf %137, %16 : vector<22x16xf32>
    %c62 = arith.constant 62 : index
    %139 = memref.load %arg1[%c62] : memref<98xf32, #tpu.memory_space<smem>>
    %140 = vector.broadcast %139 : f32 to vector<22x16xf32>
    %141 = arith.mulf %140, %23 : vector<22x16xf32>
    %142 = arith.addf %138, %141 : vector<22x16xf32>
    %143 = arith.addf %127, %142 : vector<22x16xf32>
    %144 = arith.addf %143, %135 : vector<22x16xf32>
    %145 = vector.extract_strided_slice %144 {offsets = [1, 0], sizes = [16, 16], strides = [1, 1]} : vector<22x16xf32> to vector<16x16xf32>
    %146 = arith.addf %85, %145 : vector<16x16xf32>
    %cst_50 = arith.constant 0.000000e+00 : f32
    %147 = vector.broadcast %cst_50 : f32 to vector<22x16xf32>
    %cst_51 = arith.constant 0.000000e+00 : f32
    %148 = vector.broadcast %cst_51 : f32 to vector<22x16xf32>
    %c14 = arith.constant 14 : index
    %149 = memref.load %arg1[%c14] : memref<98xf32, #tpu.memory_space<smem>>
    %150 = vector.broadcast %149 : f32 to vector<22x16xf32>
    %151 = arith.mulf %150, %10 : vector<22x16xf32>
    %c63 = arith.constant 63 : index
    %152 = memref.load %arg1[%c63] : memref<98xf32, #tpu.memory_space<smem>>
    %153 = vector.broadcast %152 : f32 to vector<22x16xf32>
    %154 = arith.mulf %153, %17 : vector<22x16xf32>
    %155 = arith.addf %151, %154 : vector<22x16xf32>
    %156 = arith.addf %147, %155 : vector<22x16xf32>
    %c15 = arith.constant 15 : index
    %157 = memref.load %arg1[%c15] : memref<98xf32, #tpu.memory_space<smem>>
    %158 = vector.broadcast %157 : f32 to vector<22x16xf32>
    %159 = arith.mulf %158, %11 : vector<22x16xf32>
    %c64 = arith.constant 64 : index
    %160 = memref.load %arg1[%c64] : memref<98xf32, #tpu.memory_space<smem>>
    %161 = vector.broadcast %160 : f32 to vector<22x16xf32>
    %162 = arith.mulf %161, %18 : vector<22x16xf32>
    %163 = arith.addf %159, %162 : vector<22x16xf32>
    %164 = arith.addf %148, %163 : vector<22x16xf32>
    %c16 = arith.constant 16 : index
    %165 = memref.load %arg1[%c16] : memref<98xf32, #tpu.memory_space<smem>>
    %166 = vector.broadcast %165 : f32 to vector<22x16xf32>
    %167 = arith.mulf %166, %12 : vector<22x16xf32>
    %c65 = arith.constant 65 : index
    %168 = memref.load %arg1[%c65] : memref<98xf32, #tpu.memory_space<smem>>
    %169 = vector.broadcast %168 : f32 to vector<22x16xf32>
    %170 = arith.mulf %169, %19 : vector<22x16xf32>
    %171 = arith.addf %167, %170 : vector<22x16xf32>
    %172 = arith.addf %156, %171 : vector<22x16xf32>
    %c17 = arith.constant 17 : index
    %173 = memref.load %arg1[%c17] : memref<98xf32, #tpu.memory_space<smem>>
    %174 = vector.broadcast %173 : f32 to vector<22x16xf32>
    %175 = arith.mulf %174, %13 : vector<22x16xf32>
    %c66 = arith.constant 66 : index
    %176 = memref.load %arg1[%c66] : memref<98xf32, #tpu.memory_space<smem>>
    %177 = vector.broadcast %176 : f32 to vector<22x16xf32>
    %178 = arith.mulf %177, %20 : vector<22x16xf32>
    %179 = arith.addf %175, %178 : vector<22x16xf32>
    %180 = arith.addf %164, %179 : vector<22x16xf32>
    %c18 = arith.constant 18 : index
    %181 = memref.load %arg1[%c18] : memref<98xf32, #tpu.memory_space<smem>>
    %182 = vector.broadcast %181 : f32 to vector<22x16xf32>
    %183 = arith.mulf %182, %14 : vector<22x16xf32>
    %c67 = arith.constant 67 : index
    %184 = memref.load %arg1[%c67] : memref<98xf32, #tpu.memory_space<smem>>
    %185 = vector.broadcast %184 : f32 to vector<22x16xf32>
    %186 = arith.mulf %185, %21 : vector<22x16xf32>
    %187 = arith.addf %183, %186 : vector<22x16xf32>
    %188 = arith.addf %172, %187 : vector<22x16xf32>
    %c19 = arith.constant 19 : index
    %189 = memref.load %arg1[%c19] : memref<98xf32, #tpu.memory_space<smem>>
    %190 = vector.broadcast %189 : f32 to vector<22x16xf32>
    %191 = arith.mulf %190, %15 : vector<22x16xf32>
    %c68 = arith.constant 68 : index
    %192 = memref.load %arg1[%c68] : memref<98xf32, #tpu.memory_space<smem>>
    %193 = vector.broadcast %192 : f32 to vector<22x16xf32>
    %194 = arith.mulf %193, %22 : vector<22x16xf32>
    %195 = arith.addf %191, %194 : vector<22x16xf32>
    %196 = arith.addf %180, %195 : vector<22x16xf32>
    %c20 = arith.constant 20 : index
    %197 = memref.load %arg1[%c20] : memref<98xf32, #tpu.memory_space<smem>>
    %198 = vector.broadcast %197 : f32 to vector<22x16xf32>
    %199 = arith.mulf %198, %16 : vector<22x16xf32>
    %c69 = arith.constant 69 : index
    %200 = memref.load %arg1[%c69] : memref<98xf32, #tpu.memory_space<smem>>
    %201 = vector.broadcast %200 : f32 to vector<22x16xf32>
    %202 = arith.mulf %201, %23 : vector<22x16xf32>
    %203 = arith.addf %199, %202 : vector<22x16xf32>
    %204 = arith.addf %188, %203 : vector<22x16xf32>
    %205 = arith.addf %204, %196 : vector<22x16xf32>
    %206 = vector.extract_strided_slice %205 {offsets = [2, 0], sizes = [16, 16], strides = [1, 1]} : vector<22x16xf32> to vector<16x16xf32>
    %207 = arith.addf %146, %206 : vector<16x16xf32>
    %cst_52 = arith.constant 0.000000e+00 : f32
    %208 = vector.broadcast %cst_52 : f32 to vector<22x16xf32>
    %cst_53 = arith.constant 0.000000e+00 : f32
    %209 = vector.broadcast %cst_53 : f32 to vector<22x16xf32>
    %c21 = arith.constant 21 : index
    %210 = memref.load %arg1[%c21] : memref<98xf32, #tpu.memory_space<smem>>
    %211 = vector.broadcast %210 : f32 to vector<22x16xf32>
    %212 = arith.mulf %211, %10 : vector<22x16xf32>
    %c70 = arith.constant 70 : index
    %213 = memref.load %arg1[%c70] : memref<98xf32, #tpu.memory_space<smem>>
    %214 = vector.broadcast %213 : f32 to vector<22x16xf32>
    %215 = arith.mulf %214, %17 : vector<22x16xf32>
    %216 = arith.addf %212, %215 : vector<22x16xf32>
    %217 = arith.addf %208, %216 : vector<22x16xf32>
    %c22 = arith.constant 22 : index
    %218 = memref.load %arg1[%c22] : memref<98xf32, #tpu.memory_space<smem>>
    %219 = vector.broadcast %218 : f32 to vector<22x16xf32>
    %220 = arith.mulf %219, %11 : vector<22x16xf32>
    %c71 = arith.constant 71 : index
    %221 = memref.load %arg1[%c71] : memref<98xf32, #tpu.memory_space<smem>>
    %222 = vector.broadcast %221 : f32 to vector<22x16xf32>
    %223 = arith.mulf %222, %18 : vector<22x16xf32>
    %224 = arith.addf %220, %223 : vector<22x16xf32>
    %225 = arith.addf %209, %224 : vector<22x16xf32>
    %c23 = arith.constant 23 : index
    %226 = memref.load %arg1[%c23] : memref<98xf32, #tpu.memory_space<smem>>
    %227 = vector.broadcast %226 : f32 to vector<22x16xf32>
    %228 = arith.mulf %227, %12 : vector<22x16xf32>
    %c72 = arith.constant 72 : index
    %229 = memref.load %arg1[%c72] : memref<98xf32, #tpu.memory_space<smem>>
    %230 = vector.broadcast %229 : f32 to vector<22x16xf32>
    %231 = arith.mulf %230, %19 : vector<22x16xf32>
    %232 = arith.addf %228, %231 : vector<22x16xf32>
    %233 = arith.addf %217, %232 : vector<22x16xf32>
    %c24 = arith.constant 24 : index
    %234 = memref.load %arg1[%c24] : memref<98xf32, #tpu.memory_space<smem>>
    %235 = vector.broadcast %234 : f32 to vector<22x16xf32>
    %236 = arith.mulf %235, %13 : vector<22x16xf32>
    %c73 = arith.constant 73 : index
    %237 = memref.load %arg1[%c73] : memref<98xf32, #tpu.memory_space<smem>>
    %238 = vector.broadcast %237 : f32 to vector<22x16xf32>
    %239 = arith.mulf %238, %20 : vector<22x16xf32>
    %240 = arith.addf %236, %239 : vector<22x16xf32>
    %241 = arith.addf %225, %240 : vector<22x16xf32>
    %c25 = arith.constant 25 : index
    %242 = memref.load %arg1[%c25] : memref<98xf32, #tpu.memory_space<smem>>
    %243 = vector.broadcast %242 : f32 to vector<22x16xf32>
    %244 = arith.mulf %243, %14 : vector<22x16xf32>
    %c74 = arith.constant 74 : index
    %245 = memref.load %arg1[%c74] : memref<98xf32, #tpu.memory_space<smem>>
    %246 = vector.broadcast %245 : f32 to vector<22x16xf32>
    %247 = arith.mulf %246, %21 : vector<22x16xf32>
    %248 = arith.addf %244, %247 : vector<22x16xf32>
    %249 = arith.addf %233, %248 : vector<22x16xf32>
    %c26 = arith.constant 26 : index
    %250 = memref.load %arg1[%c26] : memref<98xf32, #tpu.memory_space<smem>>
    %251 = vector.broadcast %250 : f32 to vector<22x16xf32>
    %252 = arith.mulf %251, %15 : vector<22x16xf32>
    %c75 = arith.constant 75 : index
    %253 = memref.load %arg1[%c75] : memref<98xf32, #tpu.memory_space<smem>>
    %254 = vector.broadcast %253 : f32 to vector<22x16xf32>
    %255 = arith.mulf %254, %22 : vector<22x16xf32>
    %256 = arith.addf %252, %255 : vector<22x16xf32>
    %257 = arith.addf %241, %256 : vector<22x16xf32>
    %c27 = arith.constant 27 : index
    %258 = memref.load %arg1[%c27] : memref<98xf32, #tpu.memory_space<smem>>
    %259 = vector.broadcast %258 : f32 to vector<22x16xf32>
    %260 = arith.mulf %259, %16 : vector<22x16xf32>
    %c76 = arith.constant 76 : index
    %261 = memref.load %arg1[%c76] : memref<98xf32, #tpu.memory_space<smem>>
    %262 = vector.broadcast %261 : f32 to vector<22x16xf32>
    %263 = arith.mulf %262, %23 : vector<22x16xf32>
    %264 = arith.addf %260, %263 : vector<22x16xf32>
    %265 = arith.addf %249, %264 : vector<22x16xf32>
    %266 = arith.addf %265, %257 : vector<22x16xf32>
    %267 = vector.extract_strided_slice %266 {offsets = [3, 0], sizes = [16, 16], strides = [1, 1]} : vector<22x16xf32> to vector<16x16xf32>
    %268 = arith.addf %207, %267 : vector<16x16xf32>
    %cst_54 = arith.constant 0.000000e+00 : f32
    %269 = vector.broadcast %cst_54 : f32 to vector<22x16xf32>
    %cst_55 = arith.constant 0.000000e+00 : f32
    %270 = vector.broadcast %cst_55 : f32 to vector<22x16xf32>
    %c28 = arith.constant 28 : index
    %271 = memref.load %arg1[%c28] : memref<98xf32, #tpu.memory_space<smem>>
    %272 = vector.broadcast %271 : f32 to vector<22x16xf32>
    %273 = arith.mulf %272, %10 : vector<22x16xf32>
    %c77 = arith.constant 77 : index
    %274 = memref.load %arg1[%c77] : memref<98xf32, #tpu.memory_space<smem>>
    %275 = vector.broadcast %274 : f32 to vector<22x16xf32>
    %276 = arith.mulf %275, %17 : vector<22x16xf32>
    %277 = arith.addf %273, %276 : vector<22x16xf32>
    %278 = arith.addf %269, %277 : vector<22x16xf32>
    %c29 = arith.constant 29 : index
    %279 = memref.load %arg1[%c29] : memref<98xf32, #tpu.memory_space<smem>>
    %280 = vector.broadcast %279 : f32 to vector<22x16xf32>
    %281 = arith.mulf %280, %11 : vector<22x16xf32>
    %c78 = arith.constant 78 : index
    %282 = memref.load %arg1[%c78] : memref<98xf32, #tpu.memory_space<smem>>
    %283 = vector.broadcast %282 : f32 to vector<22x16xf32>
    %284 = arith.mulf %283, %18 : vector<22x16xf32>
    %285 = arith.addf %281, %284 : vector<22x16xf32>
    %286 = arith.addf %270, %285 : vector<22x16xf32>
    %c30 = arith.constant 30 : index
    %287 = memref.load %arg1[%c30] : memref<98xf32, #tpu.memory_space<smem>>
    %288 = vector.broadcast %287 : f32 to vector<22x16xf32>
    %289 = arith.mulf %288, %12 : vector<22x16xf32>
    %c79 = arith.constant 79 : index
    %290 = memref.load %arg1[%c79] : memref<98xf32, #tpu.memory_space<smem>>
    %291 = vector.broadcast %290 : f32 to vector<22x16xf32>
    %292 = arith.mulf %291, %19 : vector<22x16xf32>
    %293 = arith.addf %289, %292 : vector<22x16xf32>
    %294 = arith.addf %278, %293 : vector<22x16xf32>
    %c31 = arith.constant 31 : index
    %295 = memref.load %arg1[%c31] : memref<98xf32, #tpu.memory_space<smem>>
    %296 = vector.broadcast %295 : f32 to vector<22x16xf32>
    %297 = arith.mulf %296, %13 : vector<22x16xf32>
    %c80 = arith.constant 80 : index
    %298 = memref.load %arg1[%c80] : memref<98xf32, #tpu.memory_space<smem>>
    %299 = vector.broadcast %298 : f32 to vector<22x16xf32>
    %300 = arith.mulf %299, %20 : vector<22x16xf32>
    %301 = arith.addf %297, %300 : vector<22x16xf32>
    %302 = arith.addf %286, %301 : vector<22x16xf32>
    %c32 = arith.constant 32 : index
    %303 = memref.load %arg1[%c32] : memref<98xf32, #tpu.memory_space<smem>>
    %304 = vector.broadcast %303 : f32 to vector<22x16xf32>
    %305 = arith.mulf %304, %14 : vector<22x16xf32>
    %c81 = arith.constant 81 : index
    %306 = memref.load %arg1[%c81] : memref<98xf32, #tpu.memory_space<smem>>
    %307 = vector.broadcast %306 : f32 to vector<22x16xf32>
    %308 = arith.mulf %307, %21 : vector<22x16xf32>
    %309 = arith.addf %305, %308 : vector<22x16xf32>
    %310 = arith.addf %294, %309 : vector<22x16xf32>
    %c33 = arith.constant 33 : index
    %311 = memref.load %arg1[%c33] : memref<98xf32, #tpu.memory_space<smem>>
    %312 = vector.broadcast %311 : f32 to vector<22x16xf32>
    %313 = arith.mulf %312, %15 : vector<22x16xf32>
    %c82 = arith.constant 82 : index
    %314 = memref.load %arg1[%c82] : memref<98xf32, #tpu.memory_space<smem>>
    %315 = vector.broadcast %314 : f32 to vector<22x16xf32>
    %316 = arith.mulf %315, %22 : vector<22x16xf32>
    %317 = arith.addf %313, %316 : vector<22x16xf32>
    %318 = arith.addf %302, %317 : vector<22x16xf32>
    %c34 = arith.constant 34 : index
    %319 = memref.load %arg1[%c34] : memref<98xf32, #tpu.memory_space<smem>>
    %320 = vector.broadcast %319 : f32 to vector<22x16xf32>
    %321 = arith.mulf %320, %16 : vector<22x16xf32>
    %c83 = arith.constant 83 : index
    %322 = memref.load %arg1[%c83] : memref<98xf32, #tpu.memory_space<smem>>
    %323 = vector.broadcast %322 : f32 to vector<22x16xf32>
    %324 = arith.mulf %323, %23 : vector<22x16xf32>
    %325 = arith.addf %321, %324 : vector<22x16xf32>
    %326 = arith.addf %310, %325 : vector<22x16xf32>
    %327 = arith.addf %326, %318 : vector<22x16xf32>
    %328 = vector.extract_strided_slice %327 {offsets = [4, 0], sizes = [16, 16], strides = [1, 1]} : vector<22x16xf32> to vector<16x16xf32>
    %329 = arith.addf %268, %328 : vector<16x16xf32>
    %cst_56 = arith.constant 0.000000e+00 : f32
    %330 = vector.broadcast %cst_56 : f32 to vector<22x16xf32>
    %cst_57 = arith.constant 0.000000e+00 : f32
    %331 = vector.broadcast %cst_57 : f32 to vector<22x16xf32>
    %c35 = arith.constant 35 : index
    %332 = memref.load %arg1[%c35] : memref<98xf32, #tpu.memory_space<smem>>
    %333 = vector.broadcast %332 : f32 to vector<22x16xf32>
    %334 = arith.mulf %333, %10 : vector<22x16xf32>
    %c84 = arith.constant 84 : index
    %335 = memref.load %arg1[%c84] : memref<98xf32, #tpu.memory_space<smem>>
    %336 = vector.broadcast %335 : f32 to vector<22x16xf32>
    %337 = arith.mulf %336, %17 : vector<22x16xf32>
    %338 = arith.addf %334, %337 : vector<22x16xf32>
    %339 = arith.addf %330, %338 : vector<22x16xf32>
    %c36 = arith.constant 36 : index
    %340 = memref.load %arg1[%c36] : memref<98xf32, #tpu.memory_space<smem>>
    %341 = vector.broadcast %340 : f32 to vector<22x16xf32>
    %342 = arith.mulf %341, %11 : vector<22x16xf32>
    %c85 = arith.constant 85 : index
    %343 = memref.load %arg1[%c85] : memref<98xf32, #tpu.memory_space<smem>>
    %344 = vector.broadcast %343 : f32 to vector<22x16xf32>
    %345 = arith.mulf %344, %18 : vector<22x16xf32>
    %346 = arith.addf %342, %345 : vector<22x16xf32>
    %347 = arith.addf %331, %346 : vector<22x16xf32>
    %c37 = arith.constant 37 : index
    %348 = memref.load %arg1[%c37] : memref<98xf32, #tpu.memory_space<smem>>
    %349 = vector.broadcast %348 : f32 to vector<22x16xf32>
    %350 = arith.mulf %349, %12 : vector<22x16xf32>
    %c86 = arith.constant 86 : index
    %351 = memref.load %arg1[%c86] : memref<98xf32, #tpu.memory_space<smem>>
    %352 = vector.broadcast %351 : f32 to vector<22x16xf32>
    %353 = arith.mulf %352, %19 : vector<22x16xf32>
    %354 = arith.addf %350, %353 : vector<22x16xf32>
    %355 = arith.addf %339, %354 : vector<22x16xf32>
    %c38 = arith.constant 38 : index
    %356 = memref.load %arg1[%c38] : memref<98xf32, #tpu.memory_space<smem>>
    %357 = vector.broadcast %356 : f32 to vector<22x16xf32>
    %358 = arith.mulf %357, %13 : vector<22x16xf32>
    %c87 = arith.constant 87 : index
    %359 = memref.load %arg1[%c87] : memref<98xf32, #tpu.memory_space<smem>>
    %360 = vector.broadcast %359 : f32 to vector<22x16xf32>
    %361 = arith.mulf %360, %20 : vector<22x16xf32>
    %362 = arith.addf %358, %361 : vector<22x16xf32>
    %363 = arith.addf %347, %362 : vector<22x16xf32>
    %c39 = arith.constant 39 : index
    %364 = memref.load %arg1[%c39] : memref<98xf32, #tpu.memory_space<smem>>
    %365 = vector.broadcast %364 : f32 to vector<22x16xf32>
    %366 = arith.mulf %365, %14 : vector<22x16xf32>
    %c88 = arith.constant 88 : index
    %367 = memref.load %arg1[%c88] : memref<98xf32, #tpu.memory_space<smem>>
    %368 = vector.broadcast %367 : f32 to vector<22x16xf32>
    %369 = arith.mulf %368, %21 : vector<22x16xf32>
    %370 = arith.addf %366, %369 : vector<22x16xf32>
    %371 = arith.addf %355, %370 : vector<22x16xf32>
    %c40 = arith.constant 40 : index
    %372 = memref.load %arg1[%c40] : memref<98xf32, #tpu.memory_space<smem>>
    %373 = vector.broadcast %372 : f32 to vector<22x16xf32>
    %374 = arith.mulf %373, %15 : vector<22x16xf32>
    %c89 = arith.constant 89 : index
    %375 = memref.load %arg1[%c89] : memref<98xf32, #tpu.memory_space<smem>>
    %376 = vector.broadcast %375 : f32 to vector<22x16xf32>
    %377 = arith.mulf %376, %22 : vector<22x16xf32>
    %378 = arith.addf %374, %377 : vector<22x16xf32>
    %379 = arith.addf %363, %378 : vector<22x16xf32>
    %c41 = arith.constant 41 : index
    %380 = memref.load %arg1[%c41] : memref<98xf32, #tpu.memory_space<smem>>
    %381 = vector.broadcast %380 : f32 to vector<22x16xf32>
    %382 = arith.mulf %381, %16 : vector<22x16xf32>
    %c90 = arith.constant 90 : index
    %383 = memref.load %arg1[%c90] : memref<98xf32, #tpu.memory_space<smem>>
    %384 = vector.broadcast %383 : f32 to vector<22x16xf32>
    %385 = arith.mulf %384, %23 : vector<22x16xf32>
    %386 = arith.addf %382, %385 : vector<22x16xf32>
    %387 = arith.addf %371, %386 : vector<22x16xf32>
    %388 = arith.addf %387, %379 : vector<22x16xf32>
    %389 = vector.extract_strided_slice %388 {offsets = [5, 0], sizes = [16, 16], strides = [1, 1]} : vector<22x16xf32> to vector<16x16xf32>
    %390 = arith.addf %329, %389 : vector<16x16xf32>
    %cst_58 = arith.constant 0.000000e+00 : f32
    %391 = vector.broadcast %cst_58 : f32 to vector<22x16xf32>
    %cst_59 = arith.constant 0.000000e+00 : f32
    %392 = vector.broadcast %cst_59 : f32 to vector<22x16xf32>
    %c42 = arith.constant 42 : index
    %393 = memref.load %arg1[%c42] : memref<98xf32, #tpu.memory_space<smem>>
    %394 = vector.broadcast %393 : f32 to vector<22x16xf32>
    %395 = arith.mulf %394, %10 : vector<22x16xf32>
    %c91 = arith.constant 91 : index
    %396 = memref.load %arg1[%c91] : memref<98xf32, #tpu.memory_space<smem>>
    %397 = vector.broadcast %396 : f32 to vector<22x16xf32>
    %398 = arith.mulf %397, %17 : vector<22x16xf32>
    %399 = arith.addf %395, %398 : vector<22x16xf32>
    %400 = arith.addf %391, %399 : vector<22x16xf32>
    %c43 = arith.constant 43 : index
    %401 = memref.load %arg1[%c43] : memref<98xf32, #tpu.memory_space<smem>>
    %402 = vector.broadcast %401 : f32 to vector<22x16xf32>
    %403 = arith.mulf %402, %11 : vector<22x16xf32>
    %c92 = arith.constant 92 : index
    %404 = memref.load %arg1[%c92] : memref<98xf32, #tpu.memory_space<smem>>
    %405 = vector.broadcast %404 : f32 to vector<22x16xf32>
    %406 = arith.mulf %405, %18 : vector<22x16xf32>
    %407 = arith.addf %403, %406 : vector<22x16xf32>
    %408 = arith.addf %392, %407 : vector<22x16xf32>
    %c44 = arith.constant 44 : index
    %409 = memref.load %arg1[%c44] : memref<98xf32, #tpu.memory_space<smem>>
    %410 = vector.broadcast %409 : f32 to vector<22x16xf32>
    %411 = arith.mulf %410, %12 : vector<22x16xf32>
    %c93 = arith.constant 93 : index
    %412 = memref.load %arg1[%c93] : memref<98xf32, #tpu.memory_space<smem>>
    %413 = vector.broadcast %412 : f32 to vector<22x16xf32>
    %414 = arith.mulf %413, %19 : vector<22x16xf32>
    %415 = arith.addf %411, %414 : vector<22x16xf32>
    %416 = arith.addf %400, %415 : vector<22x16xf32>
    %c45 = arith.constant 45 : index
    %417 = memref.load %arg1[%c45] : memref<98xf32, #tpu.memory_space<smem>>
    %418 = vector.broadcast %417 : f32 to vector<22x16xf32>
    %419 = arith.mulf %418, %13 : vector<22x16xf32>
    %c94 = arith.constant 94 : index
    %420 = memref.load %arg1[%c94] : memref<98xf32, #tpu.memory_space<smem>>
    %421 = vector.broadcast %420 : f32 to vector<22x16xf32>
    %422 = arith.mulf %421, %20 : vector<22x16xf32>
    %423 = arith.addf %419, %422 : vector<22x16xf32>
    %424 = arith.addf %408, %423 : vector<22x16xf32>
    %c46 = arith.constant 46 : index
    %425 = memref.load %arg1[%c46] : memref<98xf32, #tpu.memory_space<smem>>
    %426 = vector.broadcast %425 : f32 to vector<22x16xf32>
    %427 = arith.mulf %426, %14 : vector<22x16xf32>
    %c95 = arith.constant 95 : index
    %428 = memref.load %arg1[%c95] : memref<98xf32, #tpu.memory_space<smem>>
    %429 = vector.broadcast %428 : f32 to vector<22x16xf32>
    %430 = arith.mulf %429, %21 : vector<22x16xf32>
    %431 = arith.addf %427, %430 : vector<22x16xf32>
    %432 = arith.addf %416, %431 : vector<22x16xf32>
    %c47 = arith.constant 47 : index
    %433 = memref.load %arg1[%c47] : memref<98xf32, #tpu.memory_space<smem>>
    %434 = vector.broadcast %433 : f32 to vector<22x16xf32>
    %435 = arith.mulf %434, %15 : vector<22x16xf32>
    %c96 = arith.constant 96 : index
    %436 = memref.load %arg1[%c96] : memref<98xf32, #tpu.memory_space<smem>>
    %437 = vector.broadcast %436 : f32 to vector<22x16xf32>
    %438 = arith.mulf %437, %22 : vector<22x16xf32>
    %439 = arith.addf %435, %438 : vector<22x16xf32>
    %440 = arith.addf %424, %439 : vector<22x16xf32>
    %c48 = arith.constant 48 : index
    %441 = memref.load %arg1[%c48] : memref<98xf32, #tpu.memory_space<smem>>
    %442 = vector.broadcast %441 : f32 to vector<22x16xf32>
    %443 = arith.mulf %442, %16 : vector<22x16xf32>
    %c97 = arith.constant 97 : index
    %444 = memref.load %arg1[%c97] : memref<98xf32, #tpu.memory_space<smem>>
    %445 = vector.broadcast %444 : f32 to vector<22x16xf32>
    %446 = arith.mulf %445, %23 : vector<22x16xf32>
    %447 = arith.addf %443, %446 : vector<22x16xf32>
    %448 = arith.addf %432, %447 : vector<22x16xf32>
    %449 = arith.addf %448, %440 : vector<22x16xf32>
    %450 = vector.extract_strided_slice %449 {offsets = [6, 0], sizes = [16, 16], strides = [1, 1]} : vector<22x16xf32> to vector<16x16xf32>
    %451 = arith.addf %390, %450 : vector<16x16xf32>
    %452 = arith.negf %451 : vector<16x16xf32>
    %453 = math.exp %452 : vector<16x16xf32>
    %cst_60 = arith.constant 1.000000e+00 : f32
    %454 = vector.broadcast %cst_60 : f32 to vector<16x16xf32>
    %455 = arith.addf %454, %453 : vector<16x16xf32>
    %456 = arith.divf %454, %455 : vector<16x16xf32>
    %c0_61 = arith.constant 0 : index
    %c0_62 = arith.constant 0 : index
    %c0_63 = arith.constant 0 : index
    %c0_64 = arith.constant 0 : index
    %457 = vector.load %arg3[%c0_61, %c0_62, %c0_63, %c0_64] : memref<1x1x16x16xf32, #tpu.memory_space<vmem>>, vector<1x1x16x16xf32>
    %458 = vector.shape_cast %457 : vector<1x1x16x16xf32> to vector<16x16xf32>
    %459 = vector.shape_cast %456 : vector<16x16xf32> to vector<1x1x16x16xf32>
    tpu.vector_store %arg3[%c0_61, %c0_62, %c0_63, %c0_64], %459 {strides = array<i32>} : memref<1x1x16x16xf32, #tpu.memory_space<vmem>>, vector<1x1x16x16xf32>,
    return
  }
  func.func @transform_0(%arg0: i32) -> i32 {
    %c0_i32 = arith.constant 0 : i32
    %c0_i32_0 = arith.constant 0 : i32
    return %c0_i32 : i32
  }
  func.func @transform_1(%arg0: i32) -> (i32, i32, i32, i32) {
    %c0_i32 = arith.constant 0 : i32
    %c0_i32_0 = arith.constant 0 : i32
    %c0_i32_1 = arith.constant 0 : i32
    %c0_i32_2 = arith.constant 0 : i32
    return %arg0, %c0_i32, %c0_i32_0, %c0_i32_1 : i32, i32, i32, i32
  }
  func.func @transform_2(%arg0: i32) -> (i32, i32, i32, i32) {
    %c0_i32 = arith.constant 0 : i32
    %c0_i32_0 = arith.constant 0 : i32
    %c0_i32_1 = arith.constant 0 : i32
    %c0_i32_2 = arith.constant 0 : i32
    return %arg0, %c0_i32, %c0_i32_0, %c0_i32_1 : i32, i32, i32, i32
  }
}

</mosaic_0001>

<llo_original>
// kernel: spatial_attention.2
$region0: #{spatial_attention.2}
  #allocation0 [shape = 'u32[]', space=smem, size = 0x4, offset = 0x4, fixed_abs, tag = 'smem constant byte address 0x4 - core index']
  #allocation1 [shape = 'u32[144,128]{1,0:T(1,128)}', space=vmem, size = 0x12000, scoped, tag = 'internal scratch']
  #allocation2 [shape = 'f32[4,256]{1,0:T(4,128)}', space=vmem, size = 0x1000, scoped, tag = 'scratch operand']
  #allocation3 [shape = 'f32[4,256]{1,0:T(4,128)}', space=vmem, size = 0x1000, scoped, tag = 'scratch operand']
  %s0 = inlined_call_operand.vmem [shape: f32[2,4,256], index: 0, kind: input, shape index: {}]
  %s1 = inlined_call_operand.vmem [shape: f32[2,2,256], index: 1, kind: output, shape index: {}]
  %s2 = sld [smem:[#allocation0]]
  $region45: #{spatial_attention.2} parent=0
    _
  %s4 = ssub.s32 1, %s2
  %s5 = scalar_select 0, %s4, %s2
  loop: start=0, step=1, limit=4
  $region2: #{spatial_attention.2} parent=0 // loop_pre_header
    _
  $region3: #{spatial_attention.2} parent=0 // loop_header
    %s7 = sphi 0, %s11
    %p8 = scmp.ge.s32.totalorder %s7, 4
    %s14 = sphi 0, %s26
    %s15 = sphi 0, %s22
    %s16 = sphi 0, %s14
    %s17 = sphi 0, %s15
    %s18 = sphi 0, %s16
    %s19 = sphi 0, %s17
    %s31 = sphi 0, %s33
    %s34 = sphi 0, %s31
    %s35 = sphi 0, %s34
    %s51 = sphi 0, %s35
    %s57 = sphi 0, %s59
    %s60 = sphi 0, %s57
    %s61 = sphi 0, %s60
    %s77 = sphi 0, %s61
  $region4: #{spatial_attention.2} parent=0 // loop_header_branch
    %10 = sbr.rel (%p8) target = $region8
  $region5: #{spatial_attention.2} parent=0 // loop_body
    %s12 = ssub.s32 %s7, 1
    %s13 = ssub.s32 %s7, 2
    %s20 = sadd.s32 1, %s15
    %p21 = scmp.ge.s32.totalorder %s20, 1
    %s22 = scalar_select %p21, 0, %s20
    %s23 = sadd.s32 1, %s14
    %s24 = scalar_select %p21, %s23, %s14
    %p25 = scmp.ge.s32.totalorder %s24, 2
    %s26 = scalar_select %p25, 0, %s24
    %s27 = ssub.s32 %s14, %s26
    %s28 = ssub.s32 %s15, %s22
    %s29 = sor.u32 %s27, %s28
    %p30 = scmp.eq.s32.totalorder %s29, 0
    %s32 = sadd.s32 %s31, 1
    %s33 = scalar_select %p30, %s31, %s32
    %p36 = pneg %p30
    %p37 = scmp.eq.s32.totalorder %s7, 1
    %p38 = por %p36, %p37
    %p39 = scmp.ne.s32.totalorder %s31, %s34
    %p40 = scmp.eq.s32.totalorder %s7, 0
    %p41 = por %p39, %p40
    %p42 = scmp.ne.s32.totalorder %s31, %s34
    %p43 = scmp.eq.s32.totalorder %s12, 1
    %p44 = por %p42, %p43
    %p45 = scmp.ne.s32.totalorder %s34, %s35
    %p46 = scmp.eq.s32.totalorder %s12, 0
    %p47 = por %p45, %p46
    %p48 = scmp.ne.s32.totalorder %s34, %s35
    %p49 = scmp.eq.s32.totalorder %s13, 1
    %p50 = por %p48, %p49
    %p52 = scmp.ne.s32.totalorder %s35, %s51
    %p53 = scmp.eq.s32.totalorder %s13, 0
    %p54 = por %p52, %p53
    %s55 = ssub.s32 %s14, %s26
    %p56 = scmp.eq.s32.totalorder %s55, 0
    %s58 = sadd.s32 %s57, 1
    %s59 = scalar_select %p56, %s57, %s58
    %p62 = pneg %p56
    %p63 = scmp.eq.s32.totalorder %s7, 1
    %p64 = por %p62, %p63
    %p65 = scmp.ne.s32.totalorder %s57, %s60
    %p66 = scmp.eq.s32.totalorder %s7, 0
    %p67 = por %p65, %p66
    %p68 = scmp.ne.s32.totalorder %s57, %s60
    %p69 = scmp.eq.s32.totalorder %s12, 1
    %p70 = por %p68, %p69
    %p71 = scmp.ne.s32.totalorder %s60, %s61
    %p72 = scmp.eq.s32.totalorder %s12, 0
    %p73 = por %p71, %p72
    %p74 = scmp.ne.s32.totalorder %s60, %s61
    %p75 = scmp.eq.s32.totalorder %s13, 1
    %p76 = por %p74, %p75
    %p78 = scmp.ne.s32.totalorder %s61, %s77
    %p79 = scmp.eq.s32.totalorder %s13, 0
    %p80 = por %p78, %p79
    %p81 = scmp.le.s32.totalorder 1, %s7
    %p82 = scmp.lt.s32.totalorder %s7, 3
    %p83 = pnand %p81, %p82
    %p84 = pneg %p83
    // Predicated region
    $region9: #{spatial_attention.2} parent=5 // pred_check
      _
    $region10: #{spatial_attention.2} parent=5 // pred_check_branch
      %86 = sbr.rel (%p83) target = $region12
    $region11: #{spatial_attention.2} parent=5 // pred_region
      %s87 = ssub.s32 %s7, 1
    $region12: #{spatial_attention.2} parent=5 // pred_fallthru
      _
    %p88 = scmp.lt.s32.totalorder %s7, 2
    // Predicated region
    $region13: #{spatial_attention.2} parent=5 // pred_check
      %p89 = pneg %p88
    $region14: #{spatial_attention.2} parent=5 // pred_check_branch
      %91 = sbr.rel (%p89) target = $region16
    $region15: #{spatial_attention.2} parent=5 // pred_region
      // Predicated region
      $region17: #{spatial_attention.2} parent=15 // pred_check
        %p92 = pneg %p41
      $region18: #{spatial_attention.2} parent=15 // pred_check_branch
        %94 = sbr.rel (%p92) target = $region20
      $region19: #{spatial_attention.2} parent=15 // pred_region
        %p95 = scmp.lt.s32.totalorder %s14, 1
        %s96 = scalar_select %p95, %s14, 1
        %p97 = scmp.lt.s32.totalorder %s15, 0
        %s98 = scalar_select %p97, %s15, 0
        %s99 = smul.addr %s98, 2
        %s100 = smul.addr %s96, 2
        %s101 = sadd.s32 %s99, %s100
        %s102 = smul.addr %s101, 4
        %s103 = scalar_lea.vmem %s0, %s102
      $region20: #{spatial_attention.2} parent=15 // pred_fallthru
        _
    $region16: #{spatial_attention.2} parent=5 // pred_fallthru
      _
    %p104 = scmp.le.s32.totalorder 1, %s7
    %p105 = scmp.lt.s32.totalorder %s7, 3
    %p106 = pnand %p104, %p105
    %p107 = pneg %p106
    // Predicated region
    $region21: #{spatial_attention.2} parent=5 // pred_check
      _
    $region22: #{spatial_attention.2} parent=5 // pred_check_branch
      %109 = sbr.rel (%p106) target = $region24
    $region23: #{spatial_attention.2} parent=5 // pred_region
      %s110 = ssub.s32 %s7, 1
      %p111 = scmp.lt.s32.totalorder %s16, 1
      %s112 = scalar_select %p111, %s16, 1
      %p113 = scmp.lt.s32.totalorder %s17, 0
      %s114 = scalar_select %p113, %s17, 0
      %s115 = smul.addr %s114, 2
      %s116 = smul.addr %s112, 2
      %s117 = sadd.s32 %s115, %s116
      %s118 = smul.addr %s117, 4
      %s119 = scalar_lea.vmem %s0, %s118
      %p120 = pneg %p47
      %p121 = pneg %p44
      %p122 = pneg %p73
      %p123 = pneg %p70
      %p124 = scmp.lt.s32.totalorder %s16, 1
      %s125 = scalar_select %p124, %s16, 1
      %s126 = smul.addr %s125, 2
      %s127 = smul.addr %s126, 2
      %s128 = scalar_lea.vmem %s1, %s127
      %p129 = scmp.lt.s32.totalorder %s16, 1
      %s130 = scalar_select %p129, %s16, 1
      %p131 = scmp.lt.s32.totalorder %s17, 0
      %s132 = scalar_select %p131, %s17, 0
      %s133 = smul.addr %s132, 2
      %s134 = smul.addr %s130, 2
      %s135 = sadd.s32 %s133, %s134
      %s136 = smul.addr %s135, 4
      %s137 = scalar_lea.vmem %s0, %s136
      %p138 = scmp.lt.s32.totalorder %s16, 1
      %s139 = scalar_select %p138, %s16, 1
      %s140 = smul.addr %s139, 2
      %s141 = smul.addr %s140, 2
      %s142 = scalar_lea.vmem %s1, %s141
      %p143 = scmp.eq.s32.totalorder %s17, 0
      // Predicated region
      $region25: #{spatial_attention.2} parent=23 // pred_check
        %p144 = pneg %p143
      $region26: #{spatial_attention.2} parent=23 // pred_check_branch
        %146 = sbr.rel (%p144) target = $region28
      $region27: #{spatial_attention.2} parent=23 // pred_region
        %147 = vst [vmem:[#allocation2] sm:$0xff] 0.0
        %148 = vst [vmem:[#allocation3] sm:$0xff] -inf
      $region28: #{spatial_attention.2} parent=23 // pred_fallthru
        _
      %v149 = vld [vmem:[#allocation2] sm:$0xff]
      %v150 = vld [vmem:[#allocation3] sm:$0xff]
      %s151 = smul.u32 0, 2
      %s152 = smul.addr %s151, 4
      %s153 = scalar_lea.vmem %s137, %s152
      %v154 = vld [vmem:[%s153] sm:$0xff]
      %v155 = vadd.f32 %v149, %v154
      %v156 = vmax.f32 %v150, %v154
      %157 = vst [vmem:[#allocation2] sm:$0xff] %v155
      %158 = vst [vmem:[#allocation3] sm:$0xff] %v156
      // Predicated region
      $region29: #{spatial_attention.2} parent=23 // pred_check
        %p159 = pneg %p143
      $region30: #{spatial_attention.2} parent=23 // pred_check_branch
        %161 = sbr.rel (%p159) target = $region32
      $region31: #{spatial_attention.2} parent=23 // pred_region
        %v162 = vld [vmem:[#allocation2] sm:$0xff]
        %v164 = vcombine.high %v162, %v162
        %vm166 = vcmask 1043456
        %v167 = vsel %vm166, %v162, 0.0
        %v168 = vrot.slane %v167, 4
        %v169 = vadd.f32 %v167, %v168
        %v170 = vrot.slane %v169, 2
        %v171 = vadd.f32 %v169, %v170
        %v172 = vrot.slane %v171, 1
        %v173 = vadd.f32 %v171, %v172
        %v174 = vsel %vm166, %v164, 0.0
        %v175 = vrot.slane %v174, 4
        %v176 = vadd.f32 %v174, %v175
        %v177 = vrot.slane %v176, 2
        %v178 = vadd.f32 %v176, %v177
        %v179 = vrot.slane %v178, 1
        %v180 = vadd.f32 %v178, %v179
        %v181 = vmul.f32 %v173, 0.25
        %v182 = vmul.f32 %v180, 0.25
        %v185 = vcombine.low %v181, %v182
        %v187 = vunpack.c.l.s4 1966171168
        %v188 = vunpack.c.0.s8 %v187
        %v189 = vlaneseq
        %v190 = vshrl.u32 %v189, 7
        %v191 = vsub.s32 %v188, %v190
        %v192 = vrot.slane %v185, %v191
        %v194 = vunpack.c.l.s4 1966171168
        %v195 = vunpack.c.0.s8 %v194
        %v196 = vlaneseq
        %v197 = vshrl.u32 %v196, 7
        %v198 = vsub.s32 %v195, %v197
        %v199 = vrot.slane %v192, %v198
        %v201 = vlaneseq
        %vm202 = vcmp.ge.s32.totalorder %v201, 0
        %vm203 = vcmp.lt.s32.totalorder %v201, 256
        %vm204 = vmand %vm202, %vm203
        %205 = vst.msk [vmem:[%s142] ss:$2 sm:$0x3] %vm204, %v199
        %v206 = vld [vmem:[#allocation3] sm:$0xff]
        %v208 = vcombine.high %v206, %v206
        %v210 = vsel %vm166, %v206, -inf
        %v211 = vrot.slane %v210, 4
        %v212 = vmax.f32 %v210, %v211
        %v213 = vrot.slane %v212, 2
        %v214 = vmax.f32 %v212, %v213
        %v215 = vrot.slane %v214, 1
        %v216 = vmax.f32 %v214, %v215
        %v217 = vsel %vm166, %v208, -inf
        %v218 = vrot.slane %v217, 4
        %v219 = vmax.f32 %v217, %v218
        %v220 = vrot.slane %v219, 2
        %v221 = vmax.f32 %v219, %v220
        %v222 = vrot.slane %v221, 1
        %v223 = vmax.f32 %v221, %v222
        %v226 = vcombine.low %v216, %v223
        %v228 = vunpack.c.l.s4 1966171168
        %v229 = vunpack.c.0.s8 %v228
        %v230 = vlaneseq
        %v231 = vshrl.u32 %v230, 7
        %v232 = vsub.s32 %v229, %v231
        %v233 = vrot.slane %v226, %v232
        %v235 = vunpack.c.l.s4 1966171168
        %v236 = vunpack.c.0.s8 %v235
        %v237 = vlaneseq
        %v238 = vshrl.u32 %v237, 7
        %v239 = vsub.s32 %v236, %v238
        %v240 = vrot.slane %v233, %v239
        %s242 = scalar_lea.vmem %s142, 1
        %243 = vst.msk [vmem:[%s242] ss:$2 sm:$0x3] %vm204, %v240
      $region32: #{spatial_attention.2} parent=23 // pred_fallthru
        _
      %p244 = scmp.lt.s32.totalorder %s16, 1
      %s245 = scalar_select %p244, %s16, 1
      %s246 = smul.addr %s245, 2
      %s247 = smul.addr %s246, 2
      %s248 = scalar_lea.vmem %s1, %s247
      // Predicated region
      $region33: #{spatial_attention.2} parent=23 // pred_check
        %p249 = pneg %p70
      $region34: #{spatial_attention.2} parent=23 // pred_check_branch
        %251 = sbr.rel (%p249) target = $region36
      $region35: #{spatial_attention.2} parent=23 // pred_region
        _
      $region36: #{spatial_attention.2} parent=23 // pred_fallthru
        _
    $region24: #{spatial_attention.2} parent=5 // pred_fallthru
      _
    %p252 = scmp.le.s32.totalorder 2, %s7
    // Predicated region
    $region37: #{spatial_attention.2} parent=5 // pred_check
      %p253 = pneg %p252
    $region38: #{spatial_attention.2} parent=5 // pred_check_branch
      %255 = sbr.rel (%p253) target = $region40
    $region39: #{spatial_attention.2} parent=5 // pred_region
      %s256 = ssub.s32 %s7, 2
      // Predicated region
      $region41: #{spatial_attention.2} parent=39 // pred_check
        %p257 = pneg %p76
      $region42: #{spatial_attention.2} parent=39 // pred_check_branch
        %259 = sbr.rel (%p257) target = $region44
      $region43: #{spatial_attention.2} parent=39 // pred_region
        %p260 = scmp.lt.s32.totalorder %s18, 1
        %s261 = scalar_select %p260, %s18, 1
        %s262 = smul.addr %s261, 2
        %s263 = smul.addr %s262, 2
        %s264 = scalar_lea.vmem %s1, %s263
      $region44: #{spatial_attention.2} parent=39 // pred_fallthru
        _
    $region40: #{spatial_attention.2} parent=5 // pred_fallthru
      _
  $region6: #{spatial_attention.2} parent=0 // loop_footer
    %s11 = sadd.s32 1, %s7
  $region7: #{spatial_attention.2} parent=0 // loop_footer_branch
    %6 = sbr.rel target = $region3
  $region8: #{spatial_attention.2} parent=0 // loop_exit
    _

// kernel: spatial_attention.3
$region0: #{spatial_attention.3}
  #allocation0 [shape = 'u32[]', space=smem, size = 0x4, offset = 0x4, fixed_abs, tag = 'smem constant byte address 0x4 - core index']
  #allocation1 [shape = 'u32[144,128]{1,0:T(1,128)}', space=vmem, size = 0x12000, scoped, tag = 'internal scratch']
  #allocation2 [shape = 'f32[22,22]{1,0:T(8,128)}', space=vmem, size = 0x3000, scoped, tag = 'scratch operand']
  #allocation3 [shape = 'f32[22,22]{1,0:T(8,128)}', space=vmem, size = 0x3000, scoped, tag = 'scratch operand']
  %s0 = inlined_call_operand.vmem [shape: f32[98], index: 0, kind: input, shape index: {}]
  %s1 = inlined_call_operand.vmem [shape: f32[2,2,16,16], index: 1, kind: input, shape index: {}]
  %s2 = inlined_call_operand.hbm [shape: f32[2,1,16,16], index: 2, kind: output, shape index: {}]
  %s3 = sld [smem:[#allocation0]]
  $region45: #{spatial_attention.3} parent=0
    _
  %s5 = ssub.s32 1, %s3
  %s6 = scalar_select 0, %s5, %s3
  $region1: #{spatial_attention.3} parent=0
    #allocation4 [shape = 'u8[512]{0}', space=smem, size = 0x200, scoped, tag = 'input window, operand 0, single buffered']
    #allocation5 [shape = 's32[2]{0}', space=sflag, size = 0x8, scoped, tag = 'scoped memory for spatial_attention.3']
    #allocation6 [shape = 's32[2]{0}', space=sflag, size = 0x8, scoped, tag = 'scoped memory for spatial_attention.3']
    #allocation7 [shape = 'u8[16384]{0}', space=vmem, size = 0x4000, scoped, tag = 'output window, operand 0']
    %7 = vsyncpa [#allocation6], 0
    %8 = vsyncpa [#allocation5], 0
    %s9 = scalar_lea.sflag [#allocation5], 1
    %10 = vsyncpa %s9, 0
    loop: start=0, step=1, limit=4
    $region2: #{spatial_attention.3} parent=1 // loop_pre_header
      _
    $region3: #{spatial_attention.3} parent=1 // loop_header
      %s12 = sphi 0, %s16
      %p13 = scmp.ge.s32.totalorder %s12, 4
      %s20 = sphi 0, %s20
      %s22 = sphi 0, %s20
      %s23 = sphi 0, %s22
      %s37 = sphi 0, %s23
      %s43 = sphi 0, %s45
      %s46 = sphi 0, %s43
      %s47 = sphi 0, %s46
      %s63 = sphi 0, %s47
      %s69 = sphi 0, %s71
      %s72 = sphi 0, %s69
      %s73 = sphi 0, %s72
      %s89 = sphi 0, %s73
    $region4: #{spatial_attention.3} parent=1 // loop_header_branch
      %15 = sbr.rel (%p13) target = $region8
    $region5: #{spatial_attention.3} parent=1 // loop_body
      %s17 = ssub.s32 %s12, 1
      %s18 = ssub.s32 %s12, 2
      %s19 = sadd.s32 %s12, 1
      %s21 = sadd.s32 %s20, 1
      %p24 = scmp.eq.s32.totalorder %s12, 1
      %p25 = scmp.ne.s32.totalorder %s20, %s22
      %p26 = scmp.eq.s32.totalorder %s12, 0
      %p27 = por %p25, %p26
      %p28 = scmp.ne.s32.totalorder %s20, %s22
      %p29 = scmp.eq.s32.totalorder %s17, 1
      %p30 = por %p28, %p29
      %p31 = scmp.ne.s32.totalorder %s22, %s23
      %p32 = scmp.eq.s32.totalorder %s17, 0
      %p33 = por %p31, %p32
      %p34 = scmp.ne.s32.totalorder %s22, %s23
      %p35 = scmp.eq.s32.totalorder %s18, 1
      %p36 = por %p34, %p35
      %p38 = scmp.ne.s32.totalorder %s23, %s37
      %p39 = scmp.eq.s32.totalorder %s18, 0
      %p40 = por %p38, %p39
      %s41 = ssub.s32 %s12, %s19
      %p42 = scmp.eq.s32.totalorder %s41, 0
      %s44 = sadd.s32 %s43, 1
      %s45 = scalar_select %p42, %s43, %s44
      %p48 = pneg %p42
      %p49 = scmp.eq.s32.totalorder %s12, 1
      %p50 = por %p48, %p49
      %p51 = scmp.ne.s32.totalorder %s43, %s46
      %p52 = scmp.eq.s32.totalorder %s12, 0
      %p53 = por %p51, %p52
      %p54 = scmp.ne.s32.totalorder %s43, %s46
      %p55 = scmp.eq.s32.totalorder %s17, 1
      %p56 = por %p54, %p55
      %p57 = scmp.ne.s32.totalorder %s46, %s47
      %p58 = scmp.eq.s32.totalorder %s17, 0
      %p59 = por %p57, %p58
      %p60 = scmp.ne.s32.totalorder %s46, %s47
      %p61 = scmp.eq.s32.totalorder %s18, 1
      %p62 = por %p60, %p61
      %p64 = scmp.ne.s32.totalorder %s47, %s63
      %p65 = scmp.eq.s32.totalorder %s18, 0
      %p66 = por %p64, %p65
      %s67 = ssub.s32 %s12, %s19
      %p68 = scmp.eq.s32.totalorder %s67, 0
      %s70 = sadd.s32 %s69, 1
      %s71 = scalar_select %p68, %s69, %s70
      %p74 = pneg %p68
      %p75 = scmp.eq.s32.totalorder %s12, 1
      %p76 = por %p74, %p75
      %p77 = scmp.ne.s32.totalorder %s69, %s72
      %p78 = scmp.eq.s32.totalorder %s12, 0
      %p79 = por %p77, %p78
      %p80 = scmp.ne.s32.totalorder %s69, %s72
      %p81 = scmp.eq.s32.totalorder %s17, 1
      %p82 = por %p80, %p81
      %p83 = scmp.ne.s32.totalorder %s72, %s73
      %p84 = scmp.eq.s32.totalorder %s17, 0
      %p85 = por %p83, %p84
      %p86 = scmp.ne.s32.totalorder %s72, %s73
      %p87 = scmp.eq.s32.totalorder %s18, 1
      %p88 = por %p86, %p87
      %p90 = scmp.ne.s32.totalorder %s73, %s89
      %p91 = scmp.eq.s32.totalorder %s18, 0
      %p92 = por %p90, %p91
      %p93 = scmp.le.s32.totalorder 1, %s12
      %p94 = scmp.lt.s32.totalorder %s12, 3
      %p95 = pnand %p93, %p94
      %p96 = pneg %p95
      // Predicated region
      $region9: #{spatial_attention.3} parent=5 // pred_check
        _
      $region10: #{spatial_attention.3} parent=5 // pred_check_branch
        %98 = sbr.rel (%p95) target = $region12
      $region11: #{spatial_attention.3} parent=5 // pred_region
        %s99 = ssub.s32 %s12, 1
        // Predicated region
        $region13: #{spatial_attention.3} parent=11 // pred_check
          %p100 = pneg %p33
        $region14: #{spatial_attention.3} parent=11 // pred_check_branch
          %102 = sbr.rel (%p100) target = $region16
        $region15: #{spatial_attention.3} parent=11 // pred_region
          %s104 = ssub.s32 16, 16
          %105 = vsyncadd [#allocation6], %s104
          %s107 = sshll.u32 %s0, 4
          %s108 = int_to_ptr.vmem [resolvable:$true] %s107
          %110 = dma.vmem_to_smem %s108, 16, [#allocation4], [#allocation6]
        $region16: #{spatial_attention.3} parent=11 // pred_fallthru
          _
      $region12: #{spatial_attention.3} parent=5 // pred_fallthru
        _
      %p111 = scmp.lt.s32.totalorder %s12, 2
      // Predicated region
      $region17: #{spatial_attention.3} parent=5 // pred_check
        %p112 = pneg %p111
      $region18: #{spatial_attention.3} parent=5 // pred_check_branch
        %114 = sbr.rel (%p112) target = $region20
      $region19: #{spatial_attention.3} parent=5 // pred_region
        // Predicated region
        $region21: #{spatial_attention.3} parent=19 // pred_check
          %p115 = pneg %p53
        $region22: #{spatial_attention.3} parent=19 // pred_check_branch
          %117 = sbr.rel (%p115) target = $region24
        $region23: #{spatial_attention.3} parent=19 // pred_region
          %p118 = scmp.lt.s32.totalorder %s12, 1
          %s119 = scalar_select %p118, %s12, 1
          %s120 = smul.addr %s119, 4
          %s121 = smul.addr %s120, 8
          %s122 = scalar_lea.vmem %s1, %s121
        $region24: #{spatial_attention.3} parent=19 // pred_fallthru
          _
      $region20: #{spatial_attention.3} parent=5 // pred_fallthru
        _
      %p123 = scmp.le.s32.totalorder 1, %s12
      %p124 = scmp.lt.s32.totalorder %s12, 3
      %p125 = pnand %p123, %p124
      %p126 = pneg %p125
      // Predicated region
      $region25: #{spatial_attention.3} parent=5 // pred_check
        _
      $region26: #{spatial_attention.3} parent=5 // pred_check_branch
        %128 = sbr.rel (%p125) target = $region28
      $region27: #{spatial_attention.3} parent=5 // pred_region
        %s129 = ssub.s32 %s12, 1
        // Predicated region
        $region29: #{spatial_attention.3} parent=27 // pred_check
          %p130 = pneg %p33
        $region30: #{spatial_attention.3} parent=27 // pred_check_branch
          %132 = sbr.rel (%p130) target = $region32
        $region31: #{spatial_attention.3} parent=27 // pred_region
          %133 = dma.done [#allocation6], 16
        $region32: #{spatial_attention.3} parent=27 // pred_fallthru
          _
        %134 = sfence
        %p135 = pneg %p33
        %p136 = pneg %p30
        %p137 = scmp.lt.s32.totalorder %s17, 1
        %s138 = scalar_select %p137, %s17, 1
        %s139 = smul.addr %s138, 4
        %s140 = smul.addr %s139, 8
        %s141 = scalar_lea.vmem %s1, %s140
        %p142 = pneg %p59
        %p143 = pneg %p56
        %p144 = pneg %p85
        %p145 = pneg %p82
        %s146 = sand.u32 %s72, 1
        %s147 = scalar_lea.sflag [#allocation5], %s146
        %s148 = sand.u32 %s72, 1
        %s149 = smul.addr %s148, 16
        %s150 = scalar_lea.vmem [#allocation7], %s149
        %p151 = scmp.lt.s32.totalorder %s17, 1
        %s152 = scalar_select %p151, %s17, 1
        %s153 = smul.addr %s152, 4
        %s154 = smul.addr %s153, 8
        %s155 = scalar_lea.vmem %s1, %s154
        %vm156 = vcmask 179200
        %157 = vst.msk [vmem:[#allocation2] sm:$0xff] %vm156, 0.0
        %158 = vst.msk [vmem:[#allocation2 + $0x8] sm:$0xff] %vm156, 0.0
        %vm159 = vcmask 177152
        %160 = vst.msk [vmem:[#allocation2 + $0x10] sm:$0x3f] %vm159, 0.0
        %161 = vst.msk [vmem:[#allocation3] sm:$0xff] %vm156, 0.0
        %162 = vst.msk [vmem:[#allocation3 + $0x8] sm:$0xff] %vm156, 0.0
        %163 = vst.msk [vmem:[#allocation3 + $0x10] sm:$0x3f] %vm159, 0.0
        %v164 = vld [vmem:[%s155] sm:$0xff]
        %v165 = vld [vmem:[%s155 + $0x8] sm:$0xff]
        %168 = vrot.lane.b32.xlu0 %v164, 3
        %v169 = vpop.permute.xlu0 %168
        %170 = vrot.lane.b32.xlu0 %v165, 3
        %v171 = vpop.permute.xlu0 %170
        %vm174 = vcmask 154648
        %175 = vst.msk [vmem:[#allocation2 + $0x3] sm:$0xff] %vm174, %v169
        %176 = vst.msk [vmem:[#allocation2 + $0xb] sm:$0xff] %vm174, %v171
        %s177 = scalar_lea.vmem %s155, 16
        %v178 = vld [vmem:[%s177] sm:$0xff]
        %v179 = vld [vmem:[%s177 + $0x8] sm:$0xff]
        %182 = vrot.lane.b32.xlu0 %v178, 3
        %v183 = vpop.permute.xlu0 %182
        %184 = vrot.lane.b32.xlu0 %v179, 3
        %v185 = vpop.permute.xlu0 %184
        %188 = vst.msk [vmem:[#allocation3 + $0x3] sm:$0xff] %vm174, %v183
        %189 = vst.msk [vmem:[#allocation3 + $0xb] sm:$0xff] %vm174, %v185
        %v190 = vld [vmem:[#allocation2] sm:$0xff]
        %v191 = vld [vmem:[#allocation2 + $0x8] sm:$0xff]
        %v192 = vld [vmem:[#allocation2 + $0x10] sm:$0x3f]
        %v193 = vld [vmem:[#allocation3] sm:$0xff]
        %v194 = vld [vmem:[#allocation3 + $0x8] sm:$0xff]
        %v195 = vld [vmem:[#allocation3 + $0x10] sm:$0x3f]
        %s196 = sld [smem:[#allocation4]]
        %v197 = vstv %s196
        %v198 = vmul.f32 %v197, %v190
        %v199 = vmul.f32 %v197, %v191
        %s200 = sld [smem:[#allocation4 + $0x31]]
        %v201 = vstv %s200
        %v202 = vmul.f32 %v201, %v193
        %v203 = vmul.f32 %v201, %v194
        %v204 = vadd.f32 %v198, %v202
        %v205 = vadd.f32 %v199, %v203
        %v206 = vadd.f32 %v204, 0.0
        %v207 = vadd.f32 %v205, 0.0
        %s208 = sld [smem:[#allocation4 + $0x1]]
        %v209 = vstv %s208
        %v210 = vmul.f32 %v209, %v190
        %v211 = vmul.f32 %v209, %v191
        %s212 = sld [smem:[#allocation4 + $0x32]]
        %v213 = vstv %s212
        %v214 = vmul.f32 %v213, %v193
        %v215 = vmul.f32 %v213, %v194
        %v216 = vadd.f32 %v210, %v214
        %v217 = vadd.f32 %v211, %v215
        %v218 = vadd.f32 %v216, 0.0
        %v219 = vadd.f32 %v217, 0.0
        %s220 = sld [smem:[#allocation4 + $0x2]]
        %v221 = vstv %s220
        %v222 = vmul.f32 %v221, %v190
        %v223 = vmul.f32 %v221, %v191
        %s224 = sld [smem:[#allocation4 + $0x33]]
        %v225 = vstv %s224
        %v226 = vmul.f32 %v225, %v193
        %v227 = vmul.f32 %v225, %v194
        %v228 = vadd.f32 %v222, %v226
        %v229 = vadd.f32 %v223, %v227
        %232 = vrot.lane.b32.xlu0 %v228, 126
        %v233 = vpop.permute.xlu0 %232
        %234 = vrot.lane.b32.xlu0 %v229, 126
        %v235 = vpop.permute.xlu0 %234
        %v238 = vadd.f32 %v206, %v233
        %v239 = vadd.f32 %v207, %v235
        %s240 = sld [smem:[#allocation4 + $0x3]]
        %v241 = vstv %s240
        %v242 = vmul.f32 %v241, %v190
        %v243 = vmul.f32 %v241, %v191
        %s244 = sld [smem:[#allocation4 + $0x34]]
        %v245 = vstv %s244
        %v246 = vmul.f32 %v245, %v193
        %v247 = vmul.f32 %v245, %v194
        %v248 = vadd.f32 %v242, %v246
        %v249 = vadd.f32 %v243, %v247
        %252 = vrot.lane.b32.xlu0 %v248, 126
        %v253 = vpop.permute.xlu0 %252
        %254 = vrot.lane.b32.xlu0 %v249, 126
        %v255 = vpop.permute.xlu0 %254
        %v258 = vadd.f32 %v218, %v253
        %v259 = vadd.f32 %v219, %v255
        %s260 = sld [smem:[#allocation4 + $0x4]]
        %v261 = vstv %s260
        %v262 = vmul.f32 %v261, %v190
        %v263 = vmul.f32 %v261, %v191
        %s264 = sld [smem:[#allocation4 + $0x35]]
        %v265 = vstv %s264
        %v266 = vmul.f32 %v265, %v193
        %v267 = vmul.f32 %v265, %v194
        %v268 = vadd.f32 %v262, %v266
        %v269 = vadd.f32 %v263, %v267
        %272 = vrot.lane.b32.xlu0 %v268, 124
        %v273 = vpop.permute.xlu0 %272
        %274 = vrot.lane.b32.xlu0 %v269, 124
        %v275 = vpop.permute.xlu0 %274
        %v278 = vadd.f32 %v238, %v273
        %v279 = vadd.f32 %v239, %v275
        %s280 = sld [smem:[#allocation4 + $0x5]]
        %v281 = vstv %s280
        %v282 = vmul.f32 %v281, %v190
        %v283 = vmul.f32 %v281, %v191
        %s284 = sld [smem:[#allocation4 + $0x36]]
        %v285 = vstv %s284
        %v286 = vmul.f32 %v285, %v193
        %v287 = vmul.f32 %v285, %v194
        %v288 = vadd.f32 %v282, %v286
        %v289 = vadd.f32 %v283, %v287
        %292 = vrot.lane.b32.xlu0 %v288, 124
        %v293 = vpop.permute.xlu0 %292
        %294 = vrot.lane.b32.xlu0 %v289, 124
        %v295 = vpop.permute.xlu0 %294
        %v298 = vadd.f32 %v258, %v293
        %v299 = vadd.f32 %v259, %v295
        %s300 = sld [smem:[#allocation4 + $0x6]]
        %v301 = vstv %s300
        %v302 = vmul.f32 %v301, %v190
        %v303 = vmul.f32 %v301, %v191
        %s304 = sld [smem:[#allocation4 + $0x37]]
        %v305 = vstv %s304
        %v306 = vmul.f32 %v305, %v193
        %v307 = vmul.f32 %v305, %v194
        %v308 = vadd.f32 %v302, %v306
        %v309 = vadd.f32 %v303, %v307
        %312 = vrot.lane.b32.xlu0 %v308, 122
        %v313 = vpop.permute.xlu0 %312
        %314 = vrot.lane.b32.xlu0 %v309, 122
        %v315 = vpop.permute.xlu0 %314
        %v318 = vadd.f32 %v278, %v313
        %v319 = vadd.f32 %v279, %v315
        %322 = vrot.lane.b32.xlu0 %v298, 127
        %v323 = vpop.permute.xlu0 %322
        %324 = vrot.lane.b32.xlu0 %v299, 127
        %v325 = vpop.permute.xlu0 %324
        %v328 = vadd.f32 %v318, %v323
        %v329 = vadd.f32 %v319, %v325
        %v330 = vadd.f32 %v328, 0.0
        %v331 = vadd.f32 %v329, 0.0
        %s332 = sld [smem:[#allocation4 + $0x7]]
        %v333 = vstv %s332
        %v334 = vmul.f32 %v333, %v190
        %v335 = vmul.f32 %v333, %v191
        %v336 = vmul.f32 %v333, %v192
        %s337 = sld [smem:[#allocation4 + $0x38]]
        %v338 = vstv %s337
        %v339 = vmul.f32 %v338, %v193
        %v340 = vmul.f32 %v338, %v194
        %v341 = vmul.f32 %v338, %v195
        %v342 = vadd.f32 %v334, %v339
        %v343 = vadd.f32 %v335, %v340
        %v344 = vadd.f32 %v336, %v341
        %v345 = vadd.f32 %v342, 0.0
        %v346 = vadd.f32 %v343, 0.0
        %v347 = vadd.f32 %v344, 0.0
        %s348 = sld [smem:[#allocation4 + $0x8]]
        %v349 = vstv %s348
        %v350 = vmul.f32 %v349, %v190
        %v351 = vmul.f32 %v349, %v191
        %v352 = vmul.f32 %v349, %v192
        %s353 = sld [smem:[#allocation4 + $0x39]]
        %v354 = vstv %s353
        %v355 = vmul.f32 %v354, %v193
        %v356 = vmul.f32 %v354, %v194
        %v357 = vmul.f32 %v354, %v195
        %v358 = vadd.f32 %v350, %v355
        %v359 = vadd.f32 %v351, %v356
        %v360 = vadd.f32 %v352, %v357
        %v361 = vadd.f32 %v358, 0.0
        %v362 = vadd.f32 %v359, 0.0
        %v363 = vadd.f32 %v360, 0.0
        %s364 = sld [smem:[#allocation4 + $0x9]]
        %v365 = vstv %s364
        %v366 = vmul.f32 %v365, %v190
        %v367 = vmul.f32 %v365, %v191
        %v368 = vmul.f32 %v365, %v192
        %s369 = sld [smem:[#allocation4 + $0x3a]]
        %v370 = vstv %s369
        %v371 = vmul.f32 %v370, %v193
        %v372 = vmul.f32 %v370, %v194
        %v373 = vmul.f32 %v370, %v195
        %v374 = vadd.f32 %v366, %v371
        %v375 = vadd.f32 %v367, %v372
        %v376 = vadd.f32 %v368, %v373
        %380 = vrot.lane.b32.xlu0 %v374, 126
        %v381 = vpop.permute.xlu0 %380
        %382 = vrot.lane.b32.xlu0 %v375, 126
        %v383 = vpop.permute.xlu0 %382
        %384 = vrot.lane.b32.xlu0 %v376, 126
        %v385 = vpop.permute.xlu0 %384
        %v389 = vadd.f32 %v345, %v381
        %v390 = vadd.f32 %v346, %v383
        %v391 = vadd.f32 %v347, %v385
        %s392 = sld [smem:[#allocation4 + $0xa]]
        %v393 = vstv %s392
        %v394 = vmul.f32 %v393, %v190
        %v395 = vmul.f32 %v393, %v191
        %v396 = vmul.f32 %v393, %v192
        %s397 = sld [smem:[#allocation4 + $0x3b]]
        %v398 = vstv %s397
        %v399 = vmul.f32 %v398, %v193
        %v400 = vmul.f32 %v398, %v194
        %v401 = vmul.f32 %v398, %v195
        %v402 = vadd.f32 %v394, %v399
        %v403 = vadd.f32 %v395, %v400
        %v404 = vadd.f32 %v396, %v401
        %408 = vrot.lane.b32.xlu0 %v402, 126
        %v409 = vpop.permute.xlu0 %408
        %410 = vrot.lane.b32.xlu0 %v403, 126
        %v411 = vpop.permute.xlu0 %410
        %412 = vrot.lane.b32.xlu0 %v404, 126
        %v413 = vpop.permute.xlu0 %412
        %v417 = vadd.f32 %v361, %v409
        %v418 = vadd.f32 %v362, %v411
        %v419 = vadd.f32 %v363, %v413
        %s420 = sld [smem:[#allocation4 + $0xb]]
        %v421 = vstv %s420
        %v422 = vmul.f32 %v421, %v190
        %v423 = vmul.f32 %v421, %v191
        %v424 = vmul.f32 %v421, %v192
        %s425 = sld [smem:[#allocation4 + $0x3c]]
        %v426 = vstv %s425
        %v427 = vmul.f32 %v426, %v193
        %v428 = vmul.f32 %v426, %v194
        %v429 = vmul.f32 %v426, %v195
        %v430 = vadd.f32 %v422, %v427
        %v431 = vadd.f32 %v423, %v428
        %v432 = vadd.f32 %v424, %v429
        %436 = vrot.lane.b32.xlu0 %v430, 124
        %v437 = vpop.permute.xlu0 %436
        %438 = vrot.lane.b32.xlu0 %v431, 124
        %v439 = vpop.permute.xlu0 %438
        %440 = vrot.lane.b32.xlu0 %v432, 124
        %v441 = vpop.permute.xlu0 %440
        %v445 = vadd.f32 %v389, %v437
        %v446 = vadd.f32 %v390, %v439
        %v447 = vadd.f32 %v391, %v441
        %s448 = sld [smem:[#allocation4 + $0xc]]
        %v449 = vstv %s448
        %v450 = vmul.f32 %v449, %v190
        %v451 = vmul.f32 %v449, %v191
        %v452 = vmul.f32 %v449, %v192
        %s453 = sld [smem:[#allocation4 + $0x3d]]
        %v454 = vstv %s453
        %v455 = vmul.f32 %v454, %v193
        %v456 = vmul.f32 %v454, %v194
        %v457 = vmul.f32 %v454, %v195
        %v458 = vadd.f32 %v450, %v455
        %v459 = vadd.f32 %v451, %v456
        %v460 = vadd.f32 %v452, %v457
        %464 = vrot.lane.b32.xlu0 %v458, 124
        %v465 = vpop.permute.xlu0 %464
        %466 = vrot.lane.b32.xlu0 %v459, 124
        %v467 = vpop.permute.xlu0 %466
        %468 = vrot.lane.b32.xlu0 %v460, 124
        %v469 = vpop.permute.xlu0 %468
        %v473 = vadd.f32 %v417, %v465
        %v474 = vadd.f32 %v418, %v467
        %v475 = vadd.f32 %v419, %v469
        %s476 = sld [smem:[#allocation4 + $0xd]]
        %v477 = vstv %s476
        %v478 = vmul.f32 %v477, %v190
        %v479 = vmul.f32 %v477, %v191
        %v480 = vmul.f32 %v477, %v192
        %s481 = sld [smem:[#allocation4 + $0x3e]]
        %v482 = vstv %s481
        %v483 = vmul.f32 %v482, %v193
        %v484 = vmul.f32 %v482, %v194
        %v485 = vmul.f32 %v482, %v195
        %v486 = vadd.f32 %v478, %v483
        %v487 = vadd.f32 %v479, %v484
        %v488 = vadd.f32 %v480, %v485
        %492 = vrot.lane.b32.xlu0 %v486, 122
        %v493 = vpop.permute.xlu0 %492
        %494 = vrot.lane.b32.xlu0 %v487, 122
        %v495 = vpop.permute.xlu0 %494
        %496 = vrot.lane.b32.xlu0 %v488, 122
        %v497 = vpop.permute.xlu0 %496
        %v501 = vadd.f32 %v445, %v493
        %v502 = vadd.f32 %v446, %v495
        %v503 = vadd.f32 %v447, %v497
        %507 = vrot.lane.b32.xlu0 %v473, 127
        %v508 = vpop.permute.xlu0 %507
        %509 = vrot.lane.b32.xlu0 %v474, 127
        %v510 = vpop.permute.xlu0 %509
        %511 = vrot.lane.b32.xlu0 %v475, 127
        %v512 = vpop.permute.xlu0 %511
        %v516 = vadd.f32 %v501, %v508
        %v517 = vadd.f32 %v502, %v510
        %v518 = vadd.f32 %v503, %v512
        %vm522 = vcmask 1046528
        %v523 = vrot.slane %v516, 1
        %v524 = vrot.slane %v517, 1
        %v525 = vsel %vm522, %v523, %v524
        %v526 = vrot.slane %v518, 1
        %v527 = vsel %vm522, %v524, %v526
        %v530 = vadd.f32 %v330, %v525
        %v531 = vadd.f32 %v331, %v527
        %s532 = sld [smem:[#allocation4 + $0xe]]
        %v533 = vstv %s532
        %v534 = vmul.f32 %v533, %v190
        %v535 = vmul.f32 %v533, %v191
        %v536 = vmul.f32 %v533, %v192
        %s537 = sld [smem:[#allocation4 + $0x3f]]
        %v538 = vstv %s537
        %v539 = vmul.f32 %v538, %v193
        %v540 = vmul.f32 %v538, %v194
        %v541 = vmul.f32 %v538, %v195
        %v542 = vadd.f32 %v534, %v539
        %v543 = vadd.f32 %v535, %v540
        %v544 = vadd.f32 %v536, %v541
        %v545 = vadd.f32 %v542, 0.0
        %v546 = vadd.f32 %v543, 0.0
        %v547 = vadd.f32 %v544, 0.0
        %s548 = sld [smem:[#allocation4 + $0xf]]
        %v549 = vstv %s548
        %v550 = vmul.f32 %v549, %v190
        %v551 = vmul.f32 %v549, %v191
        %v552 = vmul.f32 %v549, %v192
        %s553 = sld [smem:[#allocation4 + $0x40]]
        %v554 = vstv %s553
        %v555 = vmul.f32 %v554, %v193
        %v556 = vmul.f32 %v554, %v194
        %v557 = vmul.f32 %v554, %v195
        %v558 = vadd.f32 %v550, %v555
        %v559 = vadd.f32 %v551, %v556
        %v560 = vadd.f32 %v552, %v557
        %v561 = vadd.f32 %v558, 0.0
        %v562 = vadd.f32 %v559, 0.0
        %v563 = vadd.f32 %v560, 0.0
        %s564 = sld [smem:[#allocation4 + $0x10]]
        %v565 = vstv %s564
        %v566 = vmul.f32 %v565, %v190
        %v567 = vmul.f32 %v565, %v191
        %v568 = vmul.f32 %v565, %v192
        %s569 = sld [smem:[#allocation4 + $0x41]]
        %v570 = vstv %s569
        %v571 = vmul.f32 %v570, %v193
        %v572 = vmul.f32 %v570, %v194
        %v573 = vmul.f32 %v570, %v195
        %v574 = vadd.f32 %v566, %v571
        %v575 = vadd.f32 %v567, %v572
        %v576 = vadd.f32 %v568, %v573
        %580 = vrot.lane.b32.xlu0 %v574, 126
        %v581 = vpop.permute.xlu0 %580
        %582 = vrot.lane.b32.xlu0 %v575, 126
        %v583 = vpop.permute.xlu0 %582
        %584 = vrot.lane.b32.xlu0 %v576, 126
        %v585 = vpop.permute.xlu0 %584
        %v589 = vadd.f32 %v545, %v581
        %v590 = vadd.f32 %v546, %v583
        %v591 = vadd.f32 %v547, %v585
        %s592 = sld [smem:[#allocation4 + $0x11]]
        %v593 = vstv %s592
        %v594 = vmul.f32 %v593, %v190
        %v595 = vmul.f32 %v593, %v191
        %v596 = vmul.f32 %v593, %v192
        %s597 = sld [smem:[#allocation4 + $0x42]]
        %v598 = vstv %s597
        %v599 = vmul.f32 %v598, %v193
        %v600 = vmul.f32 %v598, %v194
        %v601 = vmul.f32 %v598, %v195
        %v602 = vadd.f32 %v594, %v599
        %v603 = vadd.f32 %v595, %v600
        %v604 = vadd.f32 %v596, %v601
        %608 = vrot.lane.b32.xlu0 %v602, 126
        %v609 = vpop.permute.xlu0 %608
        %610 = vrot.lane.b32.xlu0 %v603, 126
        %v611 = vpop.permute.xlu0 %610
        %612 = vrot.lane.b32.xlu0 %v604, 126
        %v613 = vpop.permute.xlu0 %612
        %v617 = vadd.f32 %v561, %v609
        %v618 = vadd.f32 %v562, %v611
        %v619 = vadd.f32 %v563, %v613
        %s620 = sld [smem:[#allocation4 + $0x12]]
        %v621 = vstv %s620
        %v622 = vmul.f32 %v621, %v190
        %v623 = vmul.f32 %v621, %v191
        %v624 = vmul.f32 %v621, %v192
        %s625 = sld [smem:[#allocation4 + $0x43]]
        %v626 = vstv %s625
        %v627 = vmul.f32 %v626, %v193
        %v628 = vmul.f32 %v626, %v194
        %v629 = vmul.f32 %v626, %v195
        %v630 = vadd.f32 %v622, %v627
        %v631 = vadd.f32 %v623, %v628
        %v632 = vadd.f32 %v624, %v629
        %636 = vrot.lane.b32.xlu0 %v630, 124
        %v637 = vpop.permute.xlu0 %636
        %638 = vrot.lane.b32.xlu0 %v631, 124
        %v639 = vpop.permute.xlu0 %638
        %640 = vrot.lane.b32.xlu0 %v632, 124
        %v641 = vpop.permute.xlu0 %640
        %v645 = vadd.f32 %v589, %v637
        %v646 = vadd.f32 %v590, %v639
        %v647 = vadd.f32 %v591, %v641
        %s648 = sld [smem:[#allocation4 + $0x13]]
        %v649 = vstv %s648
        %v650 = vmul.f32 %v649, %v190
        %v651 = vmul.f32 %v649, %v191
        %v652 = vmul.f32 %v649, %v192
        %s653 = sld [smem:[#allocation4 + $0x44]]
        %v654 = vstv %s653
        %v655 = vmul.f32 %v654, %v193
        %v656 = vmul.f32 %v654, %v194
        %v657 = vmul.f32 %v654, %v195
        %v658 = vadd.f32 %v650, %v655
        %v659 = vadd.f32 %v651, %v656
        %v660 = vadd.f32 %v652, %v657
        %664 = vrot.lane.b32.xlu0 %v658, 124
        %v665 = vpop.permute.xlu0 %664
        %666 = vrot.lane.b32.xlu0 %v659, 124
        %v667 = vpop.permute.xlu0 %666
        %668 = vrot.lane.b32.xlu0 %v660, 124
        %v669 = vpop.permute.xlu0 %668
        %v673 = vadd.f32 %v617, %v665
        %v674 = vadd.f32 %v618, %v667
        %v675 = vadd.f32 %v619, %v669
        %s676 = sld [smem:[#allocation4 + $0x14]]
        %v677 = vstv %s676
        %v678 = vmul.f32 %v677, %v190
        %v679 = vmul.f32 %v677, %v191
        %v680 = vmul.f32 %v677, %v192
        %s681 = sld [smem:[#allocation4 + $0x45]]
        %v682 = vstv %s681
        %v683 = vmul.f32 %v682, %v193
        %v684 = vmul.f32 %v682, %v194
        %v685 = vmul.f32 %v682, %v195
        %v686 = vadd.f32 %v678, %v683
        %v687 = vadd.f32 %v679, %v684
        %v688 = vadd.f32 %v680, %v685
        %692 = vrot.lane.b32.xlu0 %v686, 122
        %v693 = vpop.permute.xlu0 %692
        %694 = vrot.lane.b32.xlu0 %v687, 122
        %v695 = vpop.permute.xlu0 %694
        %696 = vrot.lane.b32.xlu0 %v688, 122
        %v697 = vpop.permute.xlu0 %696
        %v701 = vadd.f32 %v645, %v693
        %v702 = vadd.f32 %v646, %v695
        %v703 = vadd.f32 %v647, %v697
        %707 = vrot.lane.b32.xlu0 %v673, 127
        %v708 = vpop.permute.xlu0 %707
        %709 = vrot.lane.b32.xlu0 %v674, 127
        %v710 = vpop.permute.xlu0 %709
        %711 = vrot.lane.b32.xlu0 %v675, 127
        %v712 = vpop.permute.xlu0 %711
        %v716 = vadd.f32 %v701, %v708
        %v717 = vadd.f32 %v702, %v710
        %v718 = vadd.f32 %v703, %v712
        %vm722 = vcmask 1045504
        %v723 = vrot.slane %v716, 2
        %v724 = vrot.slane %v717, 2
        %v725 = vsel %vm722, %v723, %v724
        %v726 = vrot.slane %v718, 2
        %v727 = vsel %vm722, %v724, %v726
        %v730 = vadd.f32 %v530, %v725
        %v731 = vadd.f32 %v531, %v727
        %s732 = sld [smem:[#allocation4 + $0x15]]
        %v733 = vstv %s732
        %v734 = vmul.f32 %v733, %v190
        %v735 = vmul.f32 %v733, %v191
        %v736 = vmul.f32 %v733, %v192
        %s737 = sld [smem:[#allocation4 + $0x46]]
        %v738 = vstv %s737
        %v739 = vmul.f32 %v738, %v193
        %v740 = vmul.f32 %v738, %v194
        %v741 = vmul.f32 %v738, %v195
        %v742 = vadd.f32 %v734, %v739
        %v743 = vadd.f32 %v735, %v740
        %v744 = vadd.f32 %v736, %v741
        %v745 = vadd.f32 %v742, 0.0
        %v746 = vadd.f32 %v743, 0.0
        %v747 = vadd.f32 %v744, 0.0
        %s748 = sld [smem:[#allocation4 + $0x16]]
        %v749 = vstv %s748
        %v750 = vmul.f32 %v749, %v190
        %v751 = vmul.f32 %v749, %v191
        %v752 = vmul.f32 %v749, %v192
        %s753 = sld [smem:[#allocation4 + $0x47]]
        %v754 = vstv %s753
        %v755 = vmul.f32 %v754, %v193
        %v756 = vmul.f32 %v754, %v194
        %v757 = vmul.f32 %v754, %v195
        %v758 = vadd.f32 %v750, %v755
        %v759 = vadd.f32 %v751, %v756
        %v760 = vadd.f32 %v752, %v757
        %v761 = vadd.f32 %v758, 0.0
        %v762 = vadd.f32 %v759, 0.0
        %v763 = vadd.f32 %v760, 0.0
        %s764 = sld [smem:[#allocation4 + $0x17]]
        %v765 = vstv %s764
        %v766 = vmul.f32 %v765, %v190
        %v767 = vmul.f32 %v765, %v191
        %v768 = vmul.f32 %v765, %v192
        %s769 = sld [smem:[#allocation4 + $0x48]]
        %v770 = vstv %s769
        %v771 = vmul.f32 %v770, %v193
        %v772 = vmul.f32 %v770, %v194
        %v773 = vmul.f32 %v770, %v195
        %v774 = vadd.f32 %v766, %v771
        %v775 = vadd.f32 %v767, %v772
        %v776 = vadd.f32 %v768, %v773
        %780 = vrot.lane.b32.xlu0 %v774, 126
        %v781 = vpop.permute.xlu0 %780
        %782 = vrot.lane.b32.xlu0 %v775, 126
        %v783 = vpop.permute.xlu0 %782
        %784 = vrot.lane.b32.xlu0 %v776, 126
        %v785 = vpop.permute.xlu0 %784
        %v789 = vadd.f32 %v745, %v781
        %v790 = vadd.f32 %v746, %v783
        %v791 = vadd.f32 %v747, %v785
        %s792 = sld [smem:[#allocation4 + $0x18]]
        %v793 = vstv %s792
        %v794 = vmul.f32 %v793, %v190
        %v795 = vmul.f32 %v793, %v191
        %v796 = vmul.f32 %v793, %v192
        %s797 = sld [smem:[#allocation4 + $0x49]]
        %v798 = vstv %s797
        %v799 = vmul.f32 %v798, %v193
        %v800 = vmul.f32 %v798, %v194
        %v801 = vmul.f32 %v798, %v195
        %v802 = vadd.f32 %v794, %v799
        %v803 = vadd.f32 %v795, %v800
        %v804 = vadd.f32 %v796, %v801
        %808 = vrot.lane.b32.xlu0 %v802, 126
        %v809 = vpop.permute.xlu0 %808
        %810 = vrot.lane.b32.xlu0 %v803, 126
        %v811 = vpop.permute.xlu0 %810
        %812 = vrot.lane.b32.xlu0 %v804, 126
        %v813 = vpop.permute.xlu0 %812
        %v817 = vadd.f32 %v761, %v809
        %v818 = vadd.f32 %v762, %v811
        %v819 = vadd.f32 %v763, %v813
        %s820 = sld [smem:[#allocation4 + $0x19]]
        %v821 = vstv %s820
        %v822 = vmul.f32 %v821, %v190
        %v823 = vmul.f32 %v821, %v191
        %v824 = vmul.f32 %v821, %v192
        %s825 = sld [smem:[#allocation4 + $0x4a]]
        %v826 = vstv %s825
        %v827 = vmul.f32 %v826, %v193
        %v828 = vmul.f32 %v826, %v194
        %v829 = vmul.f32 %v826, %v195
        %v830 = vadd.f32 %v822, %v827
        %v831 = vadd.f32 %v823, %v828
        %v832 = vadd.f32 %v824, %v829
        %836 = vrot.lane.b32.xlu0 %v830, 124
        %v837 = vpop.permute.xlu0 %836
        %838 = vrot.lane.b32.xlu0 %v831, 124
        %v839 = vpop.permute.xlu0 %838
        %840 = vrot.lane.b32.xlu0 %v832, 124
        %v841 = vpop.permute.xlu0 %840
        %v845 = vadd.f32 %v789, %v837
        %v846 = vadd.f32 %v790, %v839
        %v847 = vadd.f32 %v791, %v841
        %s848 = sld [smem:[#allocation4 + $0x1a]]
        %v849 = vstv %s848
        %v850 = vmul.f32 %v849, %v190
        %v851 = vmul.f32 %v849, %v191
        %v852 = vmul.f32 %v849, %v192
        %s853 = sld [smem:[#allocation4 + $0x4b]]
        %v854 = vstv %s853
        %v855 = vmul.f32 %v854, %v193
        %v856 = vmul.f32 %v854, %v194
        %v857 = vmul.f32 %v854, %v195
        %v858 = vadd.f32 %v850, %v855
        %v859 = vadd.f32 %v851, %v856
        %v860 = vadd.f32 %v852, %v857
        %864 = vrot.lane.b32.xlu0 %v858, 124
        %v865 = vpop.permute.xlu0 %864
        %866 = vrot.lane.b32.xlu0 %v859, 124
        %v867 = vpop.permute.xlu0 %866
        %868 = vrot.lane.b32.xlu0 %v860, 124
        %v869 = vpop.permute.xlu0 %868
        %v873 = vadd.f32 %v817, %v865
        %v874 = vadd.f32 %v818, %v867
        %v875 = vadd.f32 %v819, %v869
        %s876 = sld [smem:[#allocation4 + $0x1b]]
        %v877 = vstv %s876
        %v878 = vmul.f32 %v877, %v190
        %v879 = vmul.f32 %v877, %v191
        %v880 = vmul.f32 %v877, %v192
        %s881 = sld [smem:[#allocation4 + $0x4c]]
        %v882 = vstv %s881
        %v883 = vmul.f32 %v882, %v193
        %v884 = vmul.f32 %v882, %v194
        %v885 = vmul.f32 %v882, %v195
        %v886 = vadd.f32 %v878, %v883
        %v887 = vadd.f32 %v879, %v884
        %v888 = vadd.f32 %v880, %v885
        %892 = vrot.lane.b32.xlu0 %v886, 122
        %v893 = vpop.permute.xlu0 %892
        %894 = vrot.lane.b32.xlu0 %v887, 122
        %v895 = vpop.permute.xlu0 %894
        %896 = vrot.lane.b32.xlu0 %v888, 122
        %v897 = vpop.permute.xlu0 %896
        %v901 = vadd.f32 %v845, %v893
        %v902 = vadd.f32 %v846, %v895
        %v903 = vadd.f32 %v847, %v897
        %907 = vrot.lane.b32.xlu0 %v873, 127
        %v908 = vpop.permute.xlu0 %907
        %909 = vrot.lane.b32.xlu0 %v874, 127
        %v910 = vpop.permute.xlu0 %909
        %911 = vrot.lane.b32.xlu0 %v875, 127
        %v912 = vpop.permute.xlu0 %911
        %v916 = vadd.f32 %v901, %v908
        %v917 = vadd.f32 %v902, %v910
        %v918 = vadd.f32 %v903, %v912
        %vm922 = vcmask 1044480
        %v923 = vrot.slane %v916, 3
        %v924 = vrot.slane %v917, 3
        %v925 = vsel %vm922, %v923, %v924
        %v926 = vrot.slane %v918, 3
        %v927 = vsel %vm922, %v924, %v926
        %v930 = vadd.f32 %v730, %v925
        %v931 = vadd.f32 %v731, %v927
        %s932 = sld [smem:[#allocation4 + $0x1c]]
        %v933 = vstv %s932
        %v934 = vmul.f32 %v933, %v190
        %v935 = vmul.f32 %v933, %v191
        %v936 = vmul.f32 %v933, %v192
        %s937 = sld [smem:[#allocation4 + $0x4d]]
        %v938 = vstv %s937
        %v939 = vmul.f32 %v938, %v193
        %v940 = vmul.f32 %v938, %v194
        %v941 = vmul.f32 %v938, %v195
        %v942 = vadd.f32 %v934, %v939
        %v943 = vadd.f32 %v935, %v940
        %v944 = vadd.f32 %v936, %v941
        %v945 = vadd.f32 %v942, 0.0
        %v946 = vadd.f32 %v943, 0.0
        %v947 = vadd.f32 %v944, 0.0
        %s948 = sld [smem:[#allocation4 + $0x1d]]
        %v949 = vstv %s948
        %v950 = vmul.f32 %v949, %v190
        %v951 = vmul.f32 %v949, %v191
        %v952 = vmul.f32 %v949, %v192
        %s953 = sld [smem:[#allocation4 + $0x4e]]
        %v954 = vstv %s953
        %v955 = vmul.f32 %v954, %v193
        %v956 = vmul.f32 %v954, %v194
        %v957 = vmul.f32 %v954, %v195
        %v958 = vadd.f32 %v950, %v955
        %v959 = vadd.f32 %v951, %v956
        %v960 = vadd.f32 %v952, %v957
        %v961 = vadd.f32 %v958, 0.0
        %v962 = vadd.f32 %v959, 0.0
        %v963 = vadd.f32 %v960, 0.0
        %s964 = sld [smem:[#allocation4 + $0x1e]]
        %v965 = vstv %s964
        %v966 = vmul.f32 %v965, %v190
        %v967 = vmul.f32 %v965, %v191
        %v968 = vmul.f32 %v965, %v192
        %s969 = sld [smem:[#allocation4 + $0x4f]]
        %v970 = vstv %s969
        %v971 = vmul.f32 %v970, %v193
        %v972 = vmul.f32 %v970, %v194
        %v973 = vmul.f32 %v970, %v195
        %v974 = vadd.f32 %v966, %v971
        %v975 = vadd.f32 %v967, %v972
        %v976 = vadd.f32 %v968, %v973
        %980 = vrot.lane.b32.xlu0 %v974, 126
        %v981 = vpop.permute.xlu0 %980
        %982 = vrot.lane.b32.xlu0 %v975, 126
        %v983 = vpop.permute.xlu0 %982
        %984 = vrot.lane.b32.xlu0 %v976, 126
        %v985 = vpop.permute.xlu0 %984
        %v989 = vadd.f32 %v945, %v981
        %v990 = vadd.f32 %v946, %v983
        %v991 = vadd.f32 %v947, %v985
        %s992 = sld [smem:[#allocation4 + $0x1f]]
        %v993 = vstv %s992
        %v994 = vmul.f32 %v993, %v190
        %v995 = vmul.f32 %v993, %v191
        %v996 = vmul.f32 %v993, %v192
        %s997 = sld [smem:[#allocation4 + $0x50]]
        %v998 = vstv %s997
        %v999 = vmul.f32 %v998, %v193
        %v1000 = vmul.f32 %v998, %v194
        %v1001 = vmul.f32 %v998, %v195
        %v1002 = vadd.f32 %v994, %v999
        %v1003 = vadd.f32 %v995, %v1000
        %v1004 = vadd.f32 %v996, %v1001
        %1008 = vrot.lane.b32.xlu0 %v1002, 126
        %v1009 = vpop.permute.xlu0 %1008
        %1010 = vrot.lane.b32.xlu0 %v1003, 126
        %v1011 = vpop.permute.xlu0 %1010
        %1012 = vrot.lane.b32.xlu0 %v1004, 126
        %v1013 = vpop.permute.xlu0 %1012
        %v1017 = vadd.f32 %v961, %v1009
        %v1018 = vadd.f32 %v962, %v1011
        %v1019 = vadd.f32 %v963, %v1013
        %s1020 = sld [smem:[#allocation4 + $0x20]]
        %v1021 = vstv %s1020
        %v1022 = vmul.f32 %v1021, %v190
        %v1023 = vmul.f32 %v1021, %v191
        %v1024 = vmul.f32 %v1021, %v192
        %s1025 = sld [smem:[#allocation4 + $0x51]]
        %v1026 = vstv %s1025
        %v1027 = vmul.f32 %v1026, %v193
        %v1028 = vmul.f32 %v1026, %v194
        %v1029 = vmul.f32 %v1026, %v195
        %v1030 = vadd.f32 %v1022, %v1027
        %v1031 = vadd.f32 %v1023, %v1028
        %v1032 = vadd.f32 %v1024, %v1029
        %1036 = vrot.lane.b32.xlu0 %v1030, 124
        %v1037 = vpop.permute.xlu0 %1036
        %1038 = vrot.lane.b32.xlu0 %v1031, 124
        %v1039 = vpop.permute.xlu0 %1038
        %1040 = vrot.lane.b32.xlu0 %v1032, 124
        %v1041 = vpop.permute.xlu0 %1040
        %v1045 = vadd.f32 %v989, %v1037
        %v1046 = vadd.f32 %v990, %v1039
        %v1047 = vadd.f32 %v991, %v1041
        %s1048 = sld [smem:[#allocation4 + $0x21]]
        %v1049 = vstv %s1048
        %v1050 = vmul.f32 %v1049, %v190
        %v1051 = vmul.f32 %v1049, %v191
        %v1052 = vmul.f32 %v1049, %v192
        %s1053 = sld [smem:[#allocation4 + $0x52]]
        %v1054 = vstv %s1053
        %v1055 = vmul.f32 %v1054, %v193
        %v1056 = vmul.f32 %v1054, %v194
        %v1057 = vmul.f32 %v1054, %v195
        %v1058 = vadd.f32 %v1050, %v1055
        %v1059 = vadd.f32 %v1051, %v1056
        %v1060 = vadd.f32 %v1052, %v1057
        %1064 = vrot.lane.b32.xlu0 %v1058, 124
        %v1065 = vpop.permute.xlu0 %1064
        %1066 = vrot.lane.b32.xlu0 %v1059, 124
        %v1067 = vpop.permute.xlu0 %1066
        %1068 = vrot.lane.b32.xlu0 %v1060, 124
        %v1069 = vpop.permute.xlu0 %1068
        %v1073 = vadd.f32 %v1017, %v1065
        %v1074 = vadd.f32 %v1018, %v1067
        %v1075 = vadd.f32 %v1019, %v1069
        %s1076 = sld [smem:[#allocation4 + $0x22]]
        %v1077 = vstv %s1076
        %v1078 = vmul.f32 %v1077, %v190
        %v1079 = vmul.f32 %v1077, %v191
        %v1080 = vmul.f32 %v1077, %v192
        %s1081 = sld [smem:[#allocation4 + $0x53]]
        %v1082 = vstv %s1081
        %v1083 = vmul.f32 %v1082, %v193
        %v1084 = vmul.f32 %v1082, %v194
        %v1085 = vmul.f32 %v1082, %v195
        %v1086 = vadd.f32 %v1078, %v1083
        %v1087 = vadd.f32 %v1079, %v1084
        %v1088 = vadd.f32 %v1080, %v1085
        %1092 = vrot.lane.b32.xlu0 %v1086, 122
        %v1093 = vpop.permute.xlu0 %1092
        %1094 = vrot.lane.b32.xlu0 %v1087, 122
        %v1095 = vpop.permute.xlu0 %1094
        %1096 = vrot.lane.b32.xlu0 %v1088, 122
        %v1097 = vpop.permute.xlu0 %1096
        %v1101 = vadd.f32 %v1045, %v1093
        %v1102 = vadd.f32 %v1046, %v1095
        %v1103 = vadd.f32 %v1047, %v1097
        %1107 = vrot.lane.b32.xlu0 %v1073, 127
        %v1108 = vpop.permute.xlu0 %1107
        %1109 = vrot.lane.b32.xlu0 %v1074, 127
        %v1110 = vpop.permute.xlu0 %1109
        %1111 = vrot.lane.b32.xlu0 %v1075, 127
        %v1112 = vpop.permute.xlu0 %1111
        %v1116 = vadd.f32 %v1101, %v1108
        %v1117 = vadd.f32 %v1102, %v1110
        %v1118 = vadd.f32 %v1103, %v1112
        %vm1122 = vcmask 1043456
        %v1123 = vrot.slane %v1116, 4
        %v1124 = vrot.slane %v1117, 4
        %v1125 = vsel %vm1122, %v1123, %v1124
        %v1126 = vrot.slane %v1118, 4
        %v1127 = vsel %vm1122, %v1124, %v1126
        %v1130 = vadd.f32 %v930, %v1125
        %v1131 = vadd.f32 %v931, %v1127
        %s1132 = sld [smem:[#allocation4 + $0x23]]
        %v1133 = vstv %s1132
        %v1134 = vmul.f32 %v1133, %v190
        %v1135 = vmul.f32 %v1133, %v191
        %v1136 = vmul.f32 %v1133, %v192
        %s1137 = sld [smem:[#allocation4 + $0x54]]
        %v1138 = vstv %s1137
        %v1139 = vmul.f32 %v1138, %v193
        %v1140 = vmul.f32 %v1138, %v194
        %v1141 = vmul.f32 %v1138, %v195
        %v1142 = vadd.f32 %v1134, %v1139
        %v1143 = vadd.f32 %v1135, %v1140
        %v1144 = vadd.f32 %v1136, %v1141
        %v1145 = vadd.f32 %v1142, 0.0
        %v1146 = vadd.f32 %v1143, 0.0
        %v1147 = vadd.f32 %v1144, 0.0
        %s1148 = sld [smem:[#allocation4 + $0x24]]
        %v1149 = vstv %s1148
        %v1150 = vmul.f32 %v1149, %v190
        %v1151 = vmul.f32 %v1149, %v191
        %v1152 = vmul.f32 %v1149, %v192
        %s1153 = sld [smem:[#allocation4 + $0x55]]
        %v1154 = vstv %s1153
        %v1155 = vmul.f32 %v1154, %v193
        %v1156 = vmul.f32 %v1154, %v194
        %v1157 = vmul.f32 %v1154, %v195
        %v1158 = vadd.f32 %v1150, %v1155
        %v1159 = vadd.f32 %v1151, %v1156
        %v1160 = vadd.f32 %v1152, %v1157
        %v1161 = vadd.f32 %v1158, 0.0
        %v1162 = vadd.f32 %v1159, 0.0
        %v1163 = vadd.f32 %v1160, 0.0
        %s1164 = sld [smem:[#allocation4 + $0x25]]
        %v1165 = vstv %s1164
        %v1166 = vmul.f32 %v1165, %v190
        %v1167 = vmul.f32 %v1165, %v191
        %v1168 = vmul.f32 %v1165, %v192
        %s1169 = sld [smem:[#allocation4 + $0x56]]
        %v1170 = vstv %s1169
        %v1171 = vmul.f32 %v1170, %v193
        %v1172 = vmul.f32 %v1170, %v194
        %v1173 = vmul.f32 %v1170, %v195
        %v1174 = vadd.f32 %v1166, %v1171
        %v1175 = vadd.f32 %v1167, %v1172
        %v1176 = vadd.f32 %v1168, %v1173
        %1180 = vrot.lane.b32.xlu0 %v1174, 126
        %v1181 = vpop.permute.xlu0 %1180
        %1182 = vrot.lane.b32.xlu0 %v1175, 126
        %v1183 = vpop.permute.xlu0 %1182
        %1184 = vrot.lane.b32.xlu0 %v1176, 126
        %v1185 = vpop.permute.xlu0 %1184
        %v1189 = vadd.f32 %v1145, %v1181
        %v1190 = vadd.f32 %v1146, %v1183
        %v1191 = vadd.f32 %v1147, %v1185
        %s1192 = sld [smem:[#allocation4 + $0x26]]
        %v1193 = vstv %s1192
        %v1194 = vmul.f32 %v1193, %v190
        %v1195 = vmul.f32 %v1193, %v191
        %v1196 = vmul.f32 %v1193, %v192
        %s1197 = sld [smem:[#allocation4 + $0x57]]
        %v1198 = vstv %s1197
        %v1199 = vmul.f32 %v1198, %v193
        %v1200 = vmul.f32 %v1198, %v194
        %v1201 = vmul.f32 %v1198, %v195
        %v1202 = vadd.f32 %v1194, %v1199
        %v1203 = vadd.f32 %v1195, %v1200
        %v1204 = vadd.f32 %v1196, %v1201
        %1208 = vrot.lane.b32.xlu0 %v1202, 126
        %v1209 = vpop.permute.xlu0 %1208
        %1210 = vrot.lane.b32.xlu0 %v1203, 126
        %v1211 = vpop.permute.xlu0 %1210
        %1212 = vrot.lane.b32.xlu0 %v1204, 126
        %v1213 = vpop.permute.xlu0 %1212
        %v1217 = vadd.f32 %v1161, %v1209
        %v1218 = vadd.f32 %v1162, %v1211
        %v1219 = vadd.f32 %v1163, %v1213
        %s1220 = sld [smem:[#allocation4 + $0x27]]
        %v1221 = vstv %s1220
        %v1222 = vmul.f32 %v1221, %v190
        %v1223 = vmul.f32 %v1221, %v191
        %v1224 = vmul.f32 %v1221, %v192
        %s1225 = sld [smem:[#allocation4 + $0x58]]
        %v1226 = vstv %s1225
        %v1227 = vmul.f32 %v1226, %v193
        %v1228 = vmul.f32 %v1226, %v194
        %v1229 = vmul.f32 %v1226, %v195
        %v1230 = vadd.f32 %v1222, %v1227
        %v1231 = vadd.f32 %v1223, %v1228
        %v1232 = vadd.f32 %v1224, %v1229
        %1236 = vrot.lane.b32.xlu0 %v1230, 124
        %v1237 = vpop.permute.xlu0 %1236
        %1238 = vrot.lane.b32.xlu0 %v1231, 124
        %v1239 = vpop.permute.xlu0 %1238
        %1240 = vrot.lane.b32.xlu0 %v1232, 124
        %v1241 = vpop.permute.xlu0 %1240
        %v1245 = vadd.f32 %v1189, %v1237
        %v1246 = vadd.f32 %v1190, %v1239
        %v1247 = vadd.f32 %v1191, %v1241
        %s1248 = sld [smem:[#allocation4 + $0x28]]
        %v1249 = vstv %s1248
        %v1250 = vmul.f32 %v1249, %v190
        %v1251 = vmul.f32 %v1249, %v191
        %v1252 = vmul.f32 %v1249, %v192
        %s1253 = sld [smem:[#allocation4 + $0x59]]
        %v1254 = vstv %s1253
        %v1255 = vmul.f32 %v1254, %v193
        %v1256 = vmul.f32 %v1254, %v194
        %v1257 = vmul.f32 %v1254, %v195
        %v1258 = vadd.f32 %v1250, %v1255
        %v1259 = vadd.f32 %v1251, %v1256
        %v1260 = vadd.f32 %v1252, %v1257
        %1264 = vrot.lane.b32.xlu0 %v1258, 124
        %v1265 = vpop.permute.xlu0 %1264
        %1266 = vrot.lane.b32.xlu0 %v1259, 124
        %v1267 = vpop.permute.xlu0 %1266
        %1268 = vrot.lane.b32.xlu0 %v1260, 124
        %v1269 = vpop.permute.xlu0 %1268
        %v1273 = vadd.f32 %v1217, %v1265
        %v1274 = vadd.f32 %v1218, %v1267
        %v1275 = vadd.f32 %v1219, %v1269
        %s1276 = sld [smem:[#allocation4 + $0x29]]
        %v1277 = vstv %s1276
        %v1278 = vmul.f32 %v1277, %v190
        %v1279 = vmul.f32 %v1277, %v191
        %v1280 = vmul.f32 %v1277, %v192
        %s1281 = sld [smem:[#allocation4 + $0x5a]]
        %v1282 = vstv %s1281
        %v1283 = vmul.f32 %v1282, %v193
        %v1284 = vmul.f32 %v1282, %v194
        %v1285 = vmul.f32 %v1282, %v195
        %v1286 = vadd.f32 %v1278, %v1283
        %v1287 = vadd.f32 %v1279, %v1284
        %v1288 = vadd.f32 %v1280, %v1285
        %1292 = vrot.lane.b32.xlu0 %v1286, 122
        %v1293 = vpop.permute.xlu0 %1292
        %1294 = vrot.lane.b32.xlu0 %v1287, 122
        %v1295 = vpop.permute.xlu0 %1294
        %1296 = vrot.lane.b32.xlu0 %v1288, 122
        %v1297 = vpop.permute.xlu0 %1296
        %v1301 = vadd.f32 %v1245, %v1293
        %v1302 = vadd.f32 %v1246, %v1295
        %v1303 = vadd.f32 %v1247, %v1297
        %1307 = vrot.lane.b32.xlu0 %v1273, 127
        %v1308 = vpop.permute.xlu0 %1307
        %1309 = vrot.lane.b32.xlu0 %v1274, 127
        %v1310 = vpop.permute.xlu0 %1309
        %1311 = vrot.lane.b32.xlu0 %v1275, 127
        %v1312 = vpop.permute.xlu0 %1311
        %v1316 = vadd.f32 %v1301, %v1308
        %v1317 = vadd.f32 %v1302, %v1310
        %v1318 = vadd.f32 %v1303, %v1312
        %vm1322 = vcmask 1042432
        %v1323 = vrot.slane %v1316, 5
        %v1324 = vrot.slane %v1317, 5
        %v1325 = vsel %vm1322, %v1323, %v1324
        %v1326 = vrot.slane %v1318, 5
        %v1327 = vsel %vm1322, %v1324, %v1326
        %v1330 = vadd.f32 %v1130, %v1325
        %v1331 = vadd.f32 %v1131, %v1327
        %s1332 = sld [smem:[#allocation4 + $0x2a]]
        %v1333 = vstv %s1332
        %v1334 = vmul.f32 %v1333, %v190
        %v1335 = vmul.f32 %v1333, %v191
        %v1336 = vmul.f32 %v1333, %v192
        %s1337 = sld [smem:[#allocation4 + $0x5b]]
        %v1338 = vstv %s1337
        %v1339 = vmul.f32 %v1338, %v193
        %v1340 = vmul.f32 %v1338, %v194
        %v1341 = vmul.f32 %v1338, %v195
        %v1342 = vadd.f32 %v1334, %v1339
        %v1343 = vadd.f32 %v1335, %v1340
        %v1344 = vadd.f32 %v1336, %v1341
        %v1345 = vadd.f32 %v1342, 0.0
        %v1346 = vadd.f32 %v1343, 0.0
        %v1347 = vadd.f32 %v1344, 0.0
        %s1348 = sld [smem:[#allocation4 + $0x2b]]
        %v1349 = vstv %s1348
        %v1350 = vmul.f32 %v1349, %v190
        %v1351 = vmul.f32 %v1349, %v191
        %v1352 = vmul.f32 %v1349, %v192
        %s1353 = sld [smem:[#allocation4 + $0x5c]]
        %v1354 = vstv %s1353
        %v1355 = vmul.f32 %v1354, %v193
        %v1356 = vmul.f32 %v1354, %v194
        %v1357 = vmul.f32 %v1354, %v195
        %v1358 = vadd.f32 %v1350, %v1355
        %v1359 = vadd.f32 %v1351, %v1356
        %v1360 = vadd.f32 %v1352, %v1357
        %v1361 = vadd.f32 %v1358, 0.0
        %v1362 = vadd.f32 %v1359, 0.0
        %v1363 = vadd.f32 %v1360, 0.0
        %s1364 = sld [smem:[#allocation4 + $0x2c]]
        %v1365 = vstv %s1364
        %v1366 = vmul.f32 %v1365, %v190
        %v1367 = vmul.f32 %v1365, %v191
        %v1368 = vmul.f32 %v1365, %v192
        %s1369 = sld [smem:[#allocation4 + $0x5d]]
        %v1370 = vstv %s1369
        %v1371 = vmul.f32 %v1370, %v193
        %v1372 = vmul.f32 %v1370, %v194
        %v1373 = vmul.f32 %v1370, %v195
        %v1374 = vadd.f32 %v1366, %v1371
        %v1375 = vadd.f32 %v1367, %v1372
        %v1376 = vadd.f32 %v1368, %v1373
        %1380 = vrot.lane.b32.xlu0 %v1374, 126
        %v1381 = vpop.permute.xlu0 %1380
        %1382 = vrot.lane.b32.xlu0 %v1375, 126
        %v1383 = vpop.permute.xlu0 %1382
        %1384 = vrot.lane.b32.xlu0 %v1376, 126
        %v1385 = vpop.permute.xlu0 %1384
        %v1389 = vadd.f32 %v1345, %v1381
        %v1390 = vadd.f32 %v1346, %v1383
        %v1391 = vadd.f32 %v1347, %v1385
        %s1392 = sld [smem:[#allocation4 + $0x2d]]
        %v1393 = vstv %s1392
        %v1394 = vmul.f32 %v1393, %v190
        %v1395 = vmul.f32 %v1393, %v191
        %v1396 = vmul.f32 %v1393, %v192
        %s1397 = sld [smem:[#allocation4 + $0x5e]]
        %v1398 = vstv %s1397
        %v1399 = vmul.f32 %v1398, %v193
        %v1400 = vmul.f32 %v1398, %v194
        %v1401 = vmul.f32 %v1398, %v195
        %v1402 = vadd.f32 %v1394, %v1399
        %v1403 = vadd.f32 %v1395, %v1400
        %v1404 = vadd.f32 %v1396, %v1401
        %1408 = vrot.lane.b32.xlu0 %v1402, 126
        %v1409 = vpop.permute.xlu0 %1408
        %1410 = vrot.lane.b32.xlu0 %v1403, 126
        %v1411 = vpop.permute.xlu0 %1410
        %1412 = vrot.lane.b32.xlu0 %v1404, 126
        %v1413 = vpop.permute.xlu0 %1412
        %v1417 = vadd.f32 %v1361, %v1409
        %v1418 = vadd.f32 %v1362, %v1411
        %v1419 = vadd.f32 %v1363, %v1413
        %s1420 = sld [smem:[#allocation4 + $0x2e]]
        %v1421 = vstv %s1420
        %v1422 = vmul.f32 %v1421, %v190
        %v1423 = vmul.f32 %v1421, %v191
        %v1424 = vmul.f32 %v1421, %v192
        %s1425 = sld [smem:[#allocation4 + $0x5f]]
        %v1426 = vstv %s1425
        %v1427 = vmul.f32 %v1426, %v193
        %v1428 = vmul.f32 %v1426, %v194
        %v1429 = vmul.f32 %v1426, %v195
        %v1430 = vadd.f32 %v1422, %v1427
        %v1431 = vadd.f32 %v1423, %v1428
        %v1432 = vadd.f32 %v1424, %v1429
        %1436 = vrot.lane.b32.xlu0 %v1430, 124
        %v1437 = vpop.permute.xlu0 %1436
        %1438 = vrot.lane.b32.xlu0 %v1431, 124
        %v1439 = vpop.permute.xlu0 %1438
        %1440 = vrot.lane.b32.xlu0 %v1432, 124
        %v1441 = vpop.permute.xlu0 %1440
        %v1445 = vadd.f32 %v1389, %v1437
        %v1446 = vadd.f32 %v1390, %v1439
        %v1447 = vadd.f32 %v1391, %v1441
        %s1448 = sld [smem:[#allocation4 + $0x2f]]
        %v1449 = vstv %s1448
        %v1450 = vmul.f32 %v1449, %v190
        %v1451 = vmul.f32 %v1449, %v191
        %v1452 = vmul.f32 %v1449, %v192
        %s1453 = sld [smem:[#allocation4 + $0x60]]
        %v1454 = vstv %s1453
        %v1455 = vmul.f32 %v1454, %v193
        %v1456 = vmul.f32 %v1454, %v194
        %v1457 = vmul.f32 %v1454, %v195
        %v1458 = vadd.f32 %v1450, %v1455
        %v1459 = vadd.f32 %v1451, %v1456
        %v1460 = vadd.f32 %v1452, %v1457
        %1464 = vrot.lane.b32.xlu0 %v1458, 124
        %v1465 = vpop.permute.xlu0 %1464
        %1466 = vrot.lane.b32.xlu0 %v1459, 124
        %v1467 = vpop.permute.xlu0 %1466
        %1468 = vrot.lane.b32.xlu0 %v1460, 124
        %v1469 = vpop.permute.xlu0 %1468
        %v1473 = vadd.f32 %v1417, %v1465
        %v1474 = vadd.f32 %v1418, %v1467
        %v1475 = vadd.f32 %v1419, %v1469
        %s1476 = sld [smem:[#allocation4 + $0x30]]
        %v1477 = vstv %s1476
        %v1478 = vmul.f32 %v1477, %v190
        %v1479 = vmul.f32 %v1477, %v191
        %v1480 = vmul.f32 %v1477, %v192
        %s1481 = sld [smem:[#allocation4 + $0x61]]
        %v1482 = vstv %s1481
        %v1483 = vmul.f32 %v1482, %v193
        %v1484 = vmul.f32 %v1482, %v194
        %v1485 = vmul.f32 %v1482, %v195
        %v1486 = vadd.f32 %v1478, %v1483
        %v1487 = vadd.f32 %v1479, %v1484
        %v1488 = vadd.f32 %v1480, %v1485
        %1492 = vrot.lane.b32.xlu0 %v1486, 122
        %v1493 = vpop.permute.xlu0 %1492
        %1494 = vrot.lane.b32.xlu0 %v1487, 122
        %v1495 = vpop.permute.xlu0 %1494
        %1496 = vrot.lane.b32.xlu0 %v1488, 122
        %v1497 = vpop.permute.xlu0 %1496
        %v1501 = vadd.f32 %v1445, %v1493
        %v1502 = vadd.f32 %v1446, %v1495
        %v1503 = vadd.f32 %v1447, %v1497
        %1507 = vrot.lane.b32.xlu0 %v1473, 127
        %v1508 = vpop.permute.xlu0 %1507
        %1509 = vrot.lane.b32.xlu0 %v1474, 127
        %v1510 = vpop.permute.xlu0 %1509
        %1511 = vrot.lane.b32.xlu0 %v1475, 127
        %v1512 = vpop.permute.xlu0 %1511
        %v1516 = vadd.f32 %v1501, %v1508
        %v1517 = vadd.f32 %v1502, %v1510
        %v1518 = vadd.f32 %v1503, %v1512
        %vm1522 = vcmask 1041408
        %v1523 = vrot.slane %v1516, 6
        %v1524 = vrot.slane %v1517, 6
        %v1525 = vsel %vm1522, %v1523, %v1524
        %v1526 = vrot.slane %v1518, 6
        %v1527 = vsel %vm1522, %v1524, %v1526
        %v1530 = vadd.f32 %v1330, %v1525
        %v1531 = vadd.f32 %v1331, %v1527
        %v1532 = vxor.u32 %v1530, 2147483648
        %v1533 = vxor.u32 %v1531, 2147483648
        %v1534 = vmul.f32 %v1532, 1.442695
        %v1535 = vpow.pop %v1534
        %v1536 = vmul.f32 %v1533, 1.442695
        %v1537 = vpow.pop %v1536
        %v1538 = vadd.f32 %v1535, 1.0
        %v1539 = vadd.f32 %v1537, 1.0
        %v1540 = vrcp.pop %v1538
        %v1541 = vmul.f32 1.0, %v1540
        %v1542 = vrcp.pop %v1539
        %v1543 = vmul.f32 1.0, %v1542
        %vm1544 = vcmask 130048
        %1545 = vst.msk [vmem:[%s150] sm:$0xff] %vm1544, %v1541
        %1546 = vst.msk [vmem:[%s150 + $0x8] sm:$0xff] %vm1544, %v1543
        %s1547 = sand.u32 %s72, 1
        %s1548 = scalar_lea.sflag [#allocation5], %s1547
        %s1549 = sand.u32 %s72, 1
        %s1550 = smul.addr %s1549, 16
        %s1551 = scalar_lea.vmem [#allocation7], %s1550
        // Predicated region
        $region33: #{spatial_attention.3} parent=27 // pred_check
          %p1552 = pneg %p82
        $region34: #{spatial_attention.3} parent=27 // pred_check_branch
          %1554 = sbr.rel (%p1552) target = $region36
        $region35: #{spatial_attention.3} parent=27 // pred_region
          %s1556 = ssub.s32 256, 256
          %1557 = vsyncadd %s1548, %s1556
          %s1558 = smul.addr %s17, 2
          %s1559 = smul.addr %s1558, 128
          %s1560 = scalar_lea.hbm %s2, %s1559
          %s1561 = sshll.u32 %s1551, 4
          %s1562 = int_to_ptr.vmem [resolvable:$true] %s1561
          %1567 = dma.vmem_to_hbm [thread:$0]  %s1562, 256, %s1560, %s1548, 128, 128, 8
        $region36: #{spatial_attention.3} parent=27 // pred_fallthru
          _
      $region28: #{spatial_attention.3} parent=5 // pred_fallthru
        _
      %p1568 = scmp.le.s32.totalorder 2, %s12
      // Predicated region
      $region37: #{spatial_attention.3} parent=5 // pred_check
        %p1569 = pneg %p1568
      $region38: #{spatial_attention.3} parent=5 // pred_check_branch
        %1571 = sbr.rel (%p1569) target = $region40
      $region39: #{spatial_attention.3} parent=5 // pred_region
        %s1572 = ssub.s32 %s12, 2
        // Predicated region
        $region41: #{spatial_attention.3} parent=39 // pred_check
          %p1573 = pneg %p88
        $region42: #{spatial_attention.3} parent=39 // pred_check_branch
          %1575 = sbr.rel (%p1573) target = $region44
        $region43: #{spatial_attention.3} parent=39 // pred_region
          %s1576 = sand.u32 %s73, 1
          %s1577 = scalar_lea.sflag [#allocation5], %s1576
          %s1578 = sand.u32 %s73, 1
          %s1579 = smul.addr %s1578, 16
          %s1580 = scalar_lea.vmem [#allocation7], %s1579
          %1581 = dma.done %s1577, 256
        $region44: #{spatial_attention.3} parent=39 // pred_fallthru
          _
      $region40: #{spatial_attention.3} parent=5 // pred_fallthru
        _
    $region6: #{spatial_attention.3} parent=1 // loop_footer
      %s16 = sadd.s32 1, %s12
    $region7: #{spatial_attention.3} parent=1 // loop_footer_branch
      %11 = sbr.rel target = $region3
    $region8: #{spatial_attention.3} parent=1 // loop_exit
      _
    %1582 = vsyncpa [#allocation5], 1
    %s1583 = scalar_lea.sflag [#allocation5], 1
    %1584 = vsyncpa %s1583, 1
    %1585 = vsyncpa [#allocation6], 1
    %s1586 = scalar_lea.sflag [#allocation6], 1
    %1587 = vsyncpa %s1586, 1

</llo_original>
